<compile_context>
chip_gen: v5e
topology: v5e:2x2
jax: 0.10.0
libtpu: 0.0.40
codegen_flags: <defaults>
</compile_context>

<pallas_src>
import functools

import jax
import jax.numpy as jnp
from jax import lax
from jax.experimental import pallas as pl
from jax.experimental.pallas import tpu as pltpu

# --- model hyper-parameters (small, consistent with the module) -------------
HIDDEN_SIZE = 32            # stands in for base_model.config.hidden_size
HIDDEN_LAYER_SIZE = 16      # hidden_layer_size
NUM_EYE_FEATURES = 5        # num_eye_tracking_features
NUM_LABELS = 3              # num_labels
VOCAB_SIZE = 64
SEQ = 8

COMBINED_PAD = 128          # lane-padded width of concat([pooled, eye_out]) (48 real)
LABEL_PAD = 128             # lane-padded logits width (3 real)

BATCH = 256                 # demo batch (amortizes launch overhead, exercises grid)
BLOCK_B = 128               # batch rows per grid step (multiple of 8)


def _round_up(x, m):
    return ((x + m - 1) // m) * m


def _eye_tracking_kernel(
    ids_ref,     # [BM, S]   int32 token ids
    mask_ref,    # [BM, S]   float32 attention mask
    eye_ref,     # [BM, F]   float32 eye-tracking features
    table_ref,   # [V, H]    embedding table (synthetic base-model embeddings)
    wp_ref,      # [H, C]    pooler dense weight, mapped into combined cols [0, H)
    bp_ref,      # [1, C]    pooler bias (cols [0, H) nonzero)
    we_ref,      # [F, C]    eye layer weight, mapped into combined cols [H, H+HL)
    be_ref,      # [1, C]    eye layer bias (cols [H, H+HL) nonzero)
    wc_ref,      # [C, LP]   classifier weight (single merged matmul), cols [0, L) real
    bc_ref,      # [1, LP]   classifier bias
    out_ref,     # [BM, LP]  lane-dense padded logits
    *, seq_len, vocab_size, compute_dtype,
):
    ids = ids_ref[...]                                    # [BM, S] i32
    mask = mask_ref[...]                                  # [BM, S] f32
    bm = mask.shape[0]

    # --- fused embedding gather + masked mean pool ---------------------------
    # counts[b, v] = sum_s mask[b, s] * [ids[b, s] == v]   (small exact integers)
    lane_v = lax.broadcasted_iota(jnp.int32, (bm, vocab_size), 1)
    counts = jnp.zeros((bm, vocab_size), jnp.float32)
    for s in range(seq_len):                              # S is small & static
        counts = counts + jnp.where(
            ids[:, s:s + 1] == lane_v, mask[:, s:s + 1], 0.0)
    denom = jnp.maximum(jnp.sum(mask, axis=1, keepdims=True), 1.0)      # [BM, 1]

    # sum_s mask*emb[ids]  ==  counts @ table   (one MXU pass, bf16 in / f32 acc)
    summed = jnp.dot(counts.astype(compute_dtype),
                     table_ref[...].astype(compute_dtype),
                     preferred_element_type=jnp.float32)                # [BM, H]
    mean_pooled = summed * pl.reciprocal(denom, approx=True)            # [BM, H] f32

    # --- pooler dense + tanh, written directly into padded "combined" cols ---
    pooled_c = jnp.tanh(
        jnp.dot(mean_pooled.astype(compute_dtype), wp_ref[...].astype(compute_dtype),
                preferred_element_type=jnp.float32) + bp_ref[...])      # [BM, C]

    # --- eye_tracking_layer into its own (disjoint) padded columns -----------
    eye_c = (
        jnp.dot(eye_ref[...].astype(compute_dtype), we_ref[...].astype(compute_dtype),
                preferred_element_type=jnp.float32) + be_ref[...])      # [BM, C]

    # concat([pooled, eye_out]) == pooled_c + eye_c (non-zero columns disjoint)
    combined = pooled_c + eye_c                                         # [BM, C]

    # --- dropout(identity at inference) + single merged classifier matmul ----
    logits = (
        jnp.dot(combined.astype(compute_dtype), wc_ref[...].astype(compute_dtype),
                preferred_element_type=jnp.float32) + bc_ref[...])      # [BM, LP]
    out_ref[...] = logits.astype(out_ref.dtype)


def eye_tracking_model_forward(kparams, input_ids, attention_mask, eye_features,
                               *, block_b=BLOCK_B, compute_dtype=jnp.bfloat16):
    """Forward pass. input_ids/attention_mask: [B, S]; eye_features: [B, F]."""
    B, S = input_ids.shape
    F = eye_features.shape[1]
    V, H = kparams["embedding"].shape
    C = kparams["pooler_w_c"].shape[1]
    LP = kparams["cls_w_p"].shape[1]

    bm = min(block_b, _round_up(B, 8))
    Bp = _round_up(B, bm)
    if Bp != B:
        pad = Bp - B
        input_ids = jnp.pad(input_ids, ((0, pad), (0, 0)))
        attention_mask = jnp.pad(attention_mask, ((0, pad), (0, 0)))
        eye_features = jnp.pad(eye_features, ((0, pad), (0, 0)))

    kernel = functools.partial(
        _eye_tracking_kernel, seq_len=S, vocab_size=V, compute_dtype=compute_dtype)

    out_padded = pl.pallas_call(
        kernel,
        out_shape=jax.ShapeDtypeStruct((Bp, LP), jnp.float32),
        grid_spec=pltpu.PrefetchScalarGridSpec(
            num_scalar_prefetch=0,
            grid=(Bp // bm,),
            in_specs=[
                pl.BlockSpec((bm, S), lambda i: (i, 0)),     # ids
                pl.BlockSpec((bm, S), lambda i: (i, 0)),     # mask
                pl.BlockSpec((bm, F), lambda i: (i, 0)),     # eye features
                pl.BlockSpec((V, H), lambda i: (0, 0)),      # embedding table (resident)
                pl.BlockSpec((H, C), lambda i: (0, 0)),      # pooler W
                pl.BlockSpec((1, C), lambda i: (0, 0)),      # pooler b
                pl.BlockSpec((F, C), lambda i: (0, 0)),      # eye W
                pl.BlockSpec((1, C), lambda i: (0, 0)),      # eye b
                pl.BlockSpec((C, LP), lambda i: (0, 0)),     # classifier W (merged)
                pl.BlockSpec((1, LP), lambda i: (0, 0)),     # classifier b
            ],
            out_specs=pl.BlockSpec((bm, LP), lambda i: (i, 0)),
        ),
        compiler_params=pltpu.CompilerParams(
            dimension_semantics=("parallel",)),
    )(
        input_ids.astype(jnp.int32),
        attention_mask.astype(jnp.float32),
        eye_features.astype(jnp.float32),
        kparams["embedding"],
        kparams["pooler_w_c"], kparams["pooler_b_c"],
        kparams["eye_w_c"], kparams["eye_b_c"],
        kparams["cls_w_p"], kparams["cls_b_p"],
    )
    return out_padded[:B, :NUM_LABELS]


def init_params(key):
    """Logical (PyTorch-shaped) parameters."""
    ks = jax.random.split(key, 5)
    return {
        "embedding": jax.random.normal(ks[0], (VOCAB_SIZE, HIDDEN_SIZE), jnp.float32) * 0.02,
        "pooler_w": jax.random.normal(ks[1], (HIDDEN_SIZE, HIDDEN_SIZE), jnp.float32) * 0.02,
        "pooler_b": jnp.zeros((HIDDEN_SIZE,), jnp.float32),
        "eye_w": jax.random.normal(ks[2], (NUM_EYE_FEATURES, HIDDEN_LAYER_SIZE), jnp.float32) * 0.1,
        "eye_b": jnp.zeros((HIDDEN_LAYER_SIZE,), jnp.float32),
        "cls_w": jax.random.normal(
            ks[3], (HIDDEN_SIZE + HIDDEN_LAYER_SIZE, NUM_LABELS), jnp.float32) * 0.1,
        "cls_b": jnp.zeros((NUM_LABELS,), jnp.float32),
    }


def pack_kernel_params(p):
    """One-time weight layout prep: pad everything into lane-dense (128) blocks."""
    H, HL, L = HIDDEN_SIZE, HIDDEN_LAYER_SIZE, NUM_LABELS
    C, LP = COMBINED_PAD, LABEL_PAD
    return {
        "embedding": p["embedding"],
        # pooler lives in combined columns [0, H)
        "pooler_w_c": jnp.pad(p["pooler_w"], ((0, 0), (0, C - H))),
        "pooler_b_c": jnp.pad(p["pooler_b"][None, :], ((0, 0), (0, C - H))),
        # eye layer lives in combined columns [H, H+HL)
        "eye_w_c": jnp.pad(p["eye_w"], ((0, 0), (H, C - H - HL))),
        "eye_b_c": jnp.pad(p["eye_b"][None, :], ((0, 0), (H, C - H - HL))),
        # merged classifier over the padded combined space, padded label lanes
        "cls_w_p": jnp.pad(p["cls_w"], ((0, C - (H + HL)), (0, LP - L))),
        "cls_b_p": jnp.pad(p["cls_b"][None, :], ((0, 0), (0, LP - L))),
    }


def _reference_forward(params, input_ids, attention_mask, eye_features):
    """Pure-JAX f32 reference mirroring the PyTorch module semantics."""
    emb = jnp.take(params["embedding"], input_ids, axis=0)
    mask = attention_mask.astype(jnp.float32)
    summed = jnp.sum(emb * mask[:, :, None], axis=1)
    denom = jnp.maximum(jnp.sum(mask, axis=1, keepdims=True), 1.0)
    pooled = jnp.tanh((summed / denom) @ params["pooler_w"] + params["pooler_b"])
    eye_out = eye_features.astype(jnp.float32) @ params["eye_w"] + params["eye_b"]
    combined = jnp.concatenate([pooled, eye_out], axis=1)
    return combined @ params["cls_w"] + params["cls_b"]


if __name__ == "__main__":
    key = jax.random.PRNGKey(0)
    k_param, k_ids, k_eye = jax.random.split(key, 3)

    params = init_params(k_param)
    kparams = pack_kernel_params(params)

    input_ids = jax.random.randint(k_ids, (BATCH, SEQ), 0, VOCAB_SIZE, dtype=jnp.int32)
    attention_mask = jnp.concatenate(
        [jnp.ones((BATCH, SEQ - 2), jnp.int32), jnp.zeros((BATCH, 2), jnp.int32)],
        axis=1,
    )
    eye_features = jax.random.normal(k_eye, (BATCH, NUM_EYE_FEATURES), jnp.float32)

    logits = eye_tracking_model_forward(kparams, input_ids, attention_mask, eye_features)
    logits = jax.block_until_ready(logits)

    ref = _reference_forward(params, input_ids, attention_mask, eye_features)
    assert logits.shape == (BATCH, NUM_LABELS)
    assert bool(jnp.all(jnp.isfinite(logits)))
    # bf16 MXU operands + approx reciprocal vs. pure-f32 reference -> loose-ish tol.
    assert jnp.allclose(logits, ref, atol=2e-2, rtol=2e-2), (logits[:4], ref[:4])

    print("KERNEL_OK")
</pallas_src>

<mosaic_0001>
module attributes {stable_mosaic.version = 11 : i64} {
  func.func @_eye_tracking_kernel(%arg0: i32, %arg1: memref<128x8xi32, #tpu.memory_space<vmem>>, %arg2: memref<128x8xf32, #tpu.memory_space<vmem>>, %arg3: memref<128x5xf32, #tpu.memory_space<vmem>>, %arg4: memref<64x32xf32, #tpu.memory_space<vmem>>, %arg5: memref<32x128xf32, #tpu.memory_space<vmem>>, %arg6: memref<1x128xf32, #tpu.memory_space<vmem>>, %arg7: memref<5x128xf32, #tpu.memory_space<vmem>>, %arg8: memref<1x128xf32, #tpu.memory_space<vmem>>, %arg9: memref<128x128xf32, #tpu.memory_space<vmem>>, %arg10: memref<1x128xf32, #tpu.memory_space<vmem>>, %arg11: memref<128x128xf32, #tpu.memory_space<vmem>>) attributes {dimension_semantics = [#tpu.dimension_semantics<parallel>], iteration_bounds = array<i64: 2>, scalar_prefetch = 0 : i64, scratch_operands = 0 : i64, tpu.core_type = #tpu.core_type<tc>, window_params = [{transform_indices = @transform_0, window_bounds = array<i64: 128, 8>}, {transform_indices = @transform_1, window_bounds = array<i64: 128, 8>}, {transform_indices = @transform_2, window_bounds = array<i64: 128, 5>}, {pipeline_mode = #tpu.pipeline_mode<synchronous>, transform_indices = @transform_3, window_bounds = array<i64: 64, 32>}, {pipeline_mode = #tpu.pipeline_mode<synchronous>, transform_indices = @transform_4, window_bounds = array<i64: 32, 128>}, {pipeline_mode = #tpu.pipeline_mode<synchronous>, transform_indices = @transform_5, window_bounds = array<i64: 1, 128>}, {pipeline_mode = #tpu.pipeline_mode<synchronous>, transform_indices = @transform_6, window_bounds = array<i64: 5, 128>}, {pipeline_mode = #tpu.pipeline_mode<synchronous>, transform_indices = @transform_7, window_bounds = array<i64: 1, 128>}, {pipeline_mode = #tpu.pipeline_mode<synchronous>, transform_indices = @transform_8, window_bounds = array<i64: 128, 128>}, {pipeline_mode = #tpu.pipeline_mode<synchronous>, transform_indices = @transform_9, window_bounds = array<i64: 1, 128>}, {transform_indices = @transform_10, window_bounds = array<i64: 128, 128>}]} {
    %c0 = arith.constant 0 : index
    %c0_0 = arith.constant 0 : index
    %0 = vector.load %arg1[%c0, %c0_0] : memref<128x8xi32, #tpu.memory_space<vmem>>, vector<128x8xi32>
    %c0_1 = arith.constant 0 : index
    %c0_2 = arith.constant 0 : index
    %1 = vector.load %arg2[%c0_1, %c0_2] : memref<128x8xf32, #tpu.memory_space<vmem>>, vector<128x8xf32>
    %2 = tpu.iota {dimensions = array<i32: 1>} : vector<128x64xi32>
    %cst = arith.constant 0.000000e+00 : f32
    %3 = vector.broadcast %cst : f32 to vector<128x64xf32>
    %4 = vector.extract_strided_slice %0 {offsets = [0, 0], sizes = [128, 1], strides = [1, 1]} : vector<128x8xi32> to vector<128x1xi32>
    %5 = vector.broadcast %4 : vector<128x1xi32> to vector<128x64xi32>
    %6 = arith.cmpi eq, %5, %2 : vector<128x64xi32>
    %7 = vector.extract_strided_slice %1 {offsets = [0, 0], sizes = [128, 1], strides = [1, 1]} : vector<128x8xf32> to vector<128x1xf32>
    %cst_3 = arith.constant 0.000000e+00 : f32
    %8 = vector.shape_cast %7 : vector<128x1xf32> to vector<128x1xf32>
    %9 = vector.broadcast %8 : vector<128x1xf32> to vector<128x64xf32>
    %10 = vector.broadcast %cst_3 : f32 to vector<128x64xf32>
    %11 = arith.select %6, %9, %10 : vector<128x64xi1>, vector<128x64xf32>
    %12 = arith.addf %3, %11 : vector<128x64xf32>
    %13 = vector.extract_strided_slice %0 {offsets = [0, 1], sizes = [128, 1], strides = [1, 1]} : vector<128x8xi32> to vector<128x1xi32>
    %14 = vector.broadcast %13 : vector<128x1xi32> to vector<128x64xi32>
    %15 = arith.cmpi eq, %14, %2 : vector<128x64xi32>
    %16 = vector.extract_strided_slice %1 {offsets = [0, 1], sizes = [128, 1], strides = [1, 1]} : vector<128x8xf32> to vector<128x1xf32>
    %cst_4 = arith.constant 0.000000e+00 : f32
    %17 = vector.shape_cast %16 : vector<128x1xf32> to vector<128x1xf32>
    %18 = vector.broadcast %17 : vector<128x1xf32> to vector<128x64xf32>
    %19 = vector.broadcast %cst_4 : f32 to vector<128x64xf32>
    %20 = arith.select %15, %18, %19 : vector<128x64xi1>, vector<128x64xf32>
    %21 = arith.addf %12, %20 : vector<128x64xf32>
    %22 = vector.extract_strided_slice %0 {offsets = [0, 2], sizes = [128, 1], strides = [1, 1]} : vector<128x8xi32> to vector<128x1xi32>
    %23 = vector.broadcast %22 : vector<128x1xi32> to vector<128x64xi32>
    %24 = arith.cmpi eq, %23, %2 : vector<128x64xi32>
    %25 = vector.extract_strided_slice %1 {offsets = [0, 2], sizes = [128, 1], strides = [1, 1]} : vector<128x8xf32> to vector<128x1xf32>
    %cst_5 = arith.constant 0.000000e+00 : f32
    %26 = vector.shape_cast %25 : vector<128x1xf32> to vector<128x1xf32>
    %27 = vector.broadcast %26 : vector<128x1xf32> to vector<128x64xf32>
    %28 = vector.broadcast %cst_5 : f32 to vector<128x64xf32>
    %29 = arith.select %24, %27, %28 : vector<128x64xi1>, vector<128x64xf32>
    %30 = arith.addf %21, %29 : vector<128x64xf32>
    %31 = vector.extract_strided_slice %0 {offsets = [0, 3], sizes = [128, 1], strides = [1, 1]} : vector<128x8xi32> to vector<128x1xi32>
    %32 = vector.broadcast %31 : vector<128x1xi32> to vector<128x64xi32>
    %33 = arith.cmpi eq, %32, %2 : vector<128x64xi32>
    %34 = vector.extract_strided_slice %1 {offsets = [0, 3], sizes = [128, 1], strides = [1, 1]} : vector<128x8xf32> to vector<128x1xf32>
    %cst_6 = arith.constant 0.000000e+00 : f32
    %35 = vector.shape_cast %34 : vector<128x1xf32> to vector<128x1xf32>
    %36 = vector.broadcast %35 : vector<128x1xf32> to vector<128x64xf32>
    %37 = vector.broadcast %cst_6 : f32 to vector<128x64xf32>
    %38 = arith.select %33, %36, %37 : vector<128x64xi1>, vector<128x64xf32>
    %39 = arith.addf %30, %38 : vector<128x64xf32>
    %40 = vector.extract_strided_slice %0 {offsets = [0, 4], sizes = [128, 1], strides = [1, 1]} : vector<128x8xi32> to vector<128x1xi32>
    %41 = vector.broadcast %40 : vector<128x1xi32> to vector<128x64xi32>
    %42 = arith.cmpi eq, %41, %2 : vector<128x64xi32>
    %43 = vector.extract_strided_slice %1 {offsets = [0, 4], sizes = [128, 1], strides = [1, 1]} : vector<128x8xf32> to vector<128x1xf32>
    %cst_7 = arith.constant 0.000000e+00 : f32
    %44 = vector.shape_cast %43 : vector<128x1xf32> to vector<128x1xf32>
    %45 = vector.broadcast %44 : vector<128x1xf32> to vector<128x64xf32>
    %46 = vector.broadcast %cst_7 : f32 to vector<128x64xf32>
    %47 = arith.select %42, %45, %46 : vector<128x64xi1>, vector<128x64xf32>
    %48 = arith.addf %39, %47 : vector<128x64xf32>
    %49 = vector.extract_strided_slice %0 {offsets = [0, 5], sizes = [128, 1], strides = [1, 1]} : vector<128x8xi32> to vector<128x1xi32>
    %50 = vector.broadcast %49 : vector<128x1xi32> to vector<128x64xi32>
    %51 = arith.cmpi eq, %50, %2 : vector<128x64xi32>
    %52 = vector.extract_strided_slice %1 {offsets = [0, 5], sizes = [128, 1], strides = [1, 1]} : vector<128x8xf32> to vector<128x1xf32>
    %cst_8 = arith.constant 0.000000e+00 : f32
    %53 = vector.shape_cast %52 : vector<128x1xf32> to vector<128x1xf32>
    %54 = vector.broadcast %53 : vector<128x1xf32> to vector<128x64xf32>
    %55 = vector.broadcast %cst_8 : f32 to vector<128x64xf32>
    %56 = arith.select %51, %54, %55 : vector<128x64xi1>, vector<128x64xf32>
    %57 = arith.addf %48, %56 : vector<128x64xf32>
    %58 = vector.extract_strided_slice %0 {offsets = [0, 6], sizes = [128, 1], strides = [1, 1]} : vector<128x8xi32> to vector<128x1xi32>
    %59 = vector.broadcast %58 : vector<128x1xi32> to vector<128x64xi32>
    %60 = arith.cmpi eq, %59, %2 : vector<128x64xi32>
    %61 = vector.extract_strided_slice %1 {offsets = [0, 6], sizes = [128, 1], strides = [1, 1]} : vector<128x8xf32> to vector<128x1xf32>
    %cst_9 = arith.constant 0.000000e+00 : f32
    %62 = vector.shape_cast %61 : vector<128x1xf32> to vector<128x1xf32>
    %63 = vector.broadcast %62 : vector<128x1xf32> to vector<128x64xf32>
    %64 = vector.broadcast %cst_9 : f32 to vector<128x64xf32>
    %65 = arith.select %60, %63, %64 : vector<128x64xi1>, vector<128x64xf32>
    %66 = arith.addf %57, %65 : vector<128x64xf32>
    %67 = vector.extract_strided_slice %0 {offsets = [0, 7], sizes = [128, 1], strides = [1, 1]} : vector<128x8xi32> to vector<128x1xi32>
    %68 = vector.broadcast %67 : vector<128x1xi32> to vector<128x64xi32>
    %69 = arith.cmpi eq, %68, %2 : vector<128x64xi32>
    %70 = vector.extract_strided_slice %1 {offsets = [0, 7], sizes = [128, 1], strides = [1, 1]} : vector<128x8xf32> to vector<128x1xf32>
    %cst_10 = arith.constant 0.000000e+00 : f32
    %71 = vector.shape_cast %70 : vector<128x1xf32> to vector<128x1xf32>
    %72 = vector.broadcast %71 : vector<128x1xf32> to vector<128x64xf32>
    %73 = vector.broadcast %cst_10 : f32 to vector<128x64xf32>
    %74 = arith.select %69, %72, %73 : vector<128x64xi1>, vector<128x64xf32>
    %75 = arith.addf %66, %74 : vector<128x64xf32>
    %cst_11 = arith.constant dense<0.000000e+00> : vector<128xf32>
    %76 = vector.multi_reduction <add>, %1, %cst_11 [1] : vector<128x8xf32> to vector<128xf32>
    %77 = vector.shape_cast %76 : vector<128xf32> to vector<128x1xf32>
    %cst_12 = arith.constant 1.000000e+00 : f32
    %78 = vector.broadcast %cst_12 : f32 to vector<128x1xf32>
    %79 = arith.maximumf %77, %78 : vector<128x1xf32>
    %80 = arith.truncf %75 : vector<128x64xf32> to vector<128x64xbf16>
    %c0_13 = arith.constant 0 : index
    %c0_14 = arith.constant 0 : index
    %81 = vector.load %arg4[%c0_13, %c0_14] : memref<64x32xf32, #tpu.memory_space<vmem>>, vector<64x32xf32>
    %82 = arith.truncf %81 : vector<64x32xf32> to vector<64x32xbf16>
    %cst_15 = arith.constant dense<0.000000e+00> : vector<128x32xf32>
    %83 = tpu.matmul %80, %82, %cst_15 {dimension_numbers = #tpu.dot_dimension_numbers<[1], [0], [0], [1], [0, 0, 1, 1], [], []>} : vector<128x64xbf16>, vector<64x32xbf16>, vector<128x32xf32> -> vector<128x32xf32>
    %84 = tpu.reciprocal %79 {approx = true} : vector<128x1xf32> -> vector<128x1xf32>
    %85 = vector.broadcast %84 : vector<128x1xf32> to vector<128x32xf32>
    %86 = arith.mulf %83, %85 : vector<128x32xf32>
    %87 = arith.truncf %86 : vector<128x32xf32> to vector<128x32xbf16>
    %c0_16 = arith.constant 0 : index
    %c0_17 = arith.constant 0 : index
    %88 = vector.load %arg5[%c0_16, %c0_17] : memref<32x128xf32, #tpu.memory_space<vmem>>, vector<32x128xf32>
    %89 = arith.truncf %88 : vector<32x128xf32> to vector<32x128xbf16>
    %cst_18 = arith.constant dense<0.000000e+00> : vector<128x128xf32>
    %90 = tpu.matmul %87, %89, %cst_18 {dimension_numbers = #tpu.dot_dimension_numbers<[1], [0], [0], [1], [0, 0, 1, 1], [], []>} : vector<128x32xbf16>, vector<32x128xbf16>, vector<128x128xf32> -> vector<128x128xf32>
    %c0_19 = arith.constant 0 : index
    %c0_20 = arith.constant 0 : index
    %91 = vector.load %arg6[%c0_19, %c0_20] : memref<1x128xf32, #tpu.memory_space<vmem>>, vector<1x128xf32>
    %92 = vector.broadcast %91 : vector<1x128xf32> to vector<128x128xf32>
    %93 = arith.addf %90, %92 : vector<128x128xf32>
    %94 = math.tanh %93 : vector<128x128xf32>
    %c0_21 = arith.constant 0 : index
    %c0_22 = arith.constant 0 : index
    %95 = vector.load %arg3[%c0_21, %c0_22] : memref<128x5xf32, #tpu.memory_space<vmem>>, vector<128x5xf32>
    %96 = arith.truncf %95 : vector<128x5xf32> to vector<128x5xbf16>
    %c0_23 = arith.constant 0 : index
    %c0_24 = arith.constant 0 : index
    %97 = vector.load %arg7[%c0_23, %c0_24] : memref<5x128xf32, #tpu.memory_space<vmem>>, vector<5x128xf32>
    %98 = arith.truncf %97 : vector<5x128xf32> to vector<5x128xbf16>
    %cst_25 = arith.constant dense<0.000000e+00> : vector<128x128xf32>
    %99 = tpu.matmul %96, %98, %cst_25 {dimension_numbers = #tpu.dot_dimension_numbers<[1], [0], [0], [1], [0, 0, 1, 1], [], []>} : vector<128x5xbf16>, vector<5x128xbf16>, vector<128x128xf32> -> vector<128x128xf32>
    %c0_26 = arith.constant 0 : index
    %c0_27 = arith.constant 0 : index
    %100 = vector.load %arg8[%c0_26, %c0_27] : memref<1x128xf32, #tpu.memory_space<vmem>>, vector<1x128xf32>
    %101 = vector.broadcast %100 : vector<1x128xf32> to vector<128x128xf32>
    %102 = arith.addf %99, %101 : vector<128x128xf32>
    %103 = arith.addf %94, %102 : vector<128x128xf32>
    %104 = arith.truncf %103 : vector<128x128xf32> to vector<128x128xbf16>
    %c0_28 = arith.constant 0 : index
    %c0_29 = arith.constant 0 : index
    %105 = vector.load %arg9[%c0_28, %c0_29] : memref<128x128xf32, #tpu.memory_space<vmem>>, vector<128x128xf32>
    %106 = arith.truncf %105 : vector<128x128xf32> to vector<128x128xbf16>
    %cst_30 = arith.constant dense<0.000000e+00> : vector<128x128xf32>
    %107 = tpu.matmul %104, %106, %cst_30 {dimension_numbers = #tpu.dot_dimension_numbers<[1], [0], [0], [1], [0, 0, 1, 1], [], []>} : vector<128x128xbf16>, vector<128x128xbf16>, vector<128x128xf32> -> vector<128x128xf32>
    %c0_31 = arith.constant 0 : index
    %c0_32 = arith.constant 0 : index
    %108 = vector.load %arg10[%c0_31, %c0_32] : memref<1x128xf32, #tpu.memory_space<vmem>>, vector<1x128xf32>
    %109 = vector.broadcast %108 : vector<1x128xf32> to vector<128x128xf32>
    %110 = arith.addf %107, %109 : vector<128x128xf32>
    %c0_33 = arith.constant 0 : index
    %c0_34 = arith.constant 0 : index
    %111 = vector.load %arg11[%c0_33, %c0_34] : memref<128x128xf32, #tpu.memory_space<vmem>>, vector<128x128xf32>
    tpu.vector_store %arg11[%c0_33, %c0_34], %110 {strides = array<i32>} : memref<128x128xf32, #tpu.memory_space<vmem>>, vector<128x128xf32>,
    return
  }
  func.func @transform_0(%arg0: i32) -> (i32, i32) {
    %c0_i32 = arith.constant 0 : i32
    %c0_i32_0 = arith.constant 0 : i32
    return %arg0, %c0_i32 : i32, i32
  }
  func.func @transform_1(%arg0: i32) -> (i32, i32) {
    %c0_i32 = arith.constant 0 : i32
    %c0_i32_0 = arith.constant 0 : i32
    return %arg0, %c0_i32 : i32, i32
  }
  func.func @transform_2(%arg0: i32) -> (i32, i32) {
    %c0_i32 = arith.constant 0 : i32
    %c0_i32_0 = arith.constant 0 : i32
    return %arg0, %c0_i32 : i32, i32
  }
  func.func @transform_3(%arg0: i32) -> (i32, i32) {
    %c0_i32 = arith.constant 0 : i32
    %c0_i32_0 = arith.constant 0 : i32
    %c0_i32_1 = arith.constant 0 : i32
    return %c0_i32, %c0_i32_0 : i32, i32
  }
  func.func @transform_4(%arg0: i32) -> (i32, i32) {
    %c0_i32 = arith.constant 0 : i32
    %c0_i32_0 = arith.constant 0 : i32
    %c0_i32_1 = arith.constant 0 : i32
    return %c0_i32, %c0_i32_0 : i32, i32
  }
  func.func @transform_5(%arg0: i32) -> (i32, i32) {
    %c0_i32 = arith.constant 0 : i32
    %c0_i32_0 = arith.constant 0 : i32
    %c0_i32_1 = arith.constant 0 : i32
    return %c0_i32, %c0_i32_0 : i32, i32
  }
  func.func @transform_6(%arg0: i32) -> (i32, i32) {
    %c0_i32 = arith.constant 0 : i32
    %c0_i32_0 = arith.constant 0 : i32
    %c0_i32_1 = arith.constant 0 : i32
    return %c0_i32, %c0_i32_0 : i32, i32
  }
  func.func @transform_7(%arg0: i32) -> (i32, i32) {
    %c0_i32 = arith.constant 0 : i32
    %c0_i32_0 = arith.constant 0 : i32
    %c0_i32_1 = arith.constant 0 : i32
    return %c0_i32, %c0_i32_0 : i32, i32
  }
  func.func @transform_8(%arg0: i32) -> (i32, i32) {
    %c0_i32 = arith.constant 0 : i32
    %c0_i32_0 = arith.constant 0 : i32
    %c0_i32_1 = arith.constant 0 : i32
    return %c0_i32, %c0_i32_0 : i32, i32
  }
  func.func @transform_9(%arg0: i32) -> (i32, i32) {
    %c0_i32 = arith.constant 0 : i32
    %c0_i32_0 = arith.constant 0 : i32
    %c0_i32_1 = arith.constant 0 : i32
    return %c0_i32, %c0_i32_0 : i32, i32
  }
  func.func @transform_10(%arg0: i32) -> (i32, i32) {
    %c0_i32 = arith.constant 0 : i32
    %c0_i32_0 = arith.constant 0 : i32
    return %arg0, %c0_i32 : i32, i32
  }
}

</mosaic_0001>

<llo_original>
// kernel: tpu_custom_call.1
$region0: #{tpu_custom_call.1}
  #allocation0 [shape = 'u32[]', space=smem, size = 0x4, offset = 0x4, fixed_abs, tag = 'smem constant byte address 0x4 - core index']
  #allocation1 [shape = 'u32[72,128]{1,0:T(1,128)}', space=vmem, size = 0x9000, scoped, tag = 'internal scratch']
  %s0 = inlined_call_operand.vmem [shape: s32[256,8], index: 0, kind: input, shape index: {}]
  %s1 = inlined_call_operand.vmem [shape: f32[256,8], index: 1, kind: input, shape index: {}]
  %s2 = inlined_call_operand.vmem [shape: f32[256,5], index: 2, kind: input, shape index: {}]
  %s3 = inlined_call_operand.vmem [shape: f32[64,32], index: 3, kind: input, shape index: {}]
  %s4 = inlined_call_operand.vmem [shape: f32[32,128], index: 4, kind: input, shape index: {}]
  %s5 = inlined_call_operand.vmem [shape: f32[1,128], index: 5, kind: input, shape index: {}]
  %s6 = inlined_call_operand.vmem [shape: f32[5,128], index: 6, kind: input, shape index: {}]
  %s7 = inlined_call_operand.vmem [shape: f32[1,128], index: 7, kind: input, shape index: {}]
  %s8 = inlined_call_operand.vmem [shape: f32[128,128], index: 8, kind: input, shape index: {}]
  %s9 = inlined_call_operand.vmem [shape: f32[1,128], index: 9, kind: input, shape index: {}]
  %s10 = inlined_call_operand.hbm [shape: f32[256,128], index: 10, kind: output, shape index: {}]
  %s11 = sld [smem:[#allocation0]]
  $region73: #{tpu_custom_call.1} parent=0
    _
  %s13 = ssub.s32 1, %s11
  %s14 = scalar_select 0, %s13, %s11
  $region1: #{tpu_custom_call.1} parent=0
    #allocation2 [shape = 'u8[131072]{0}', space=vmem, size = 0x20000, scoped, tag = 'output window, operand 0']
    #allocation3 [shape = 's32[2]{0}', space=sflag, size = 0x8, scoped, tag = 'scoped memory for tpu_custom_call.1']
    %15 = vsyncpa [#allocation3], 0
    %s16 = scalar_lea.sflag [#allocation3], 1
    %17 = vsyncpa %s16, 0
    loop: start=0, step=1, limit=4
    $region2: #{tpu_custom_call.1} parent=1 // loop_pre_header
      _
    $region3: #{tpu_custom_call.1} parent=1 // loop_header
      %s19 = sphi 0, %s23
      %p20 = scmp.ge.s32.totalorder %s19, 4
      %s29 = sphi 0, %s31
      %s32 = sphi 0, %s29
      %s33 = sphi 0, %s32
      %s49 = sphi 0, %s33
      %s55 = sphi 0, %s57
      %s58 = sphi 0, %s55
      %s59 = sphi 0, %s58
      %s75 = sphi 0, %s59
      %s81 = sphi 0, %s83
      %s84 = sphi 0, %s81
      %s85 = sphi 0, %s84
      %s101 = sphi 0, %s85
      %s105 = sphi 0, %s105
      %s107 = sphi 0, %s105
      %s108 = sphi 0, %s107
      %s122 = sphi 0, %s108
      %s126 = sphi 0, %s126
      %s128 = sphi 0, %s126
      %s129 = sphi 0, %s128
      %s143 = sphi 0, %s129
      %s147 = sphi 0, %s147
      %s149 = sphi 0, %s147
      %s150 = sphi 0, %s149
      %s164 = sphi 0, %s150
      %s168 = sphi 0, %s168
      %s170 = sphi 0, %s168
      %s171 = sphi 0, %s170
      %s185 = sphi 0, %s171
      %s189 = sphi 0, %s189
      %s191 = sphi 0, %s189
      %s192 = sphi 0, %s191
      %s206 = sphi 0, %s192
      %s210 = sphi 0, %s210
      %s212 = sphi 0, %s210
      %s213 = sphi 0, %s212
      %s227 = sphi 0, %s213
      %s231 = sphi 0, %s231
      %s233 = sphi 0, %s231
      %s234 = sphi 0, %s233
      %s248 = sphi 0, %s234
      %s254 = sphi 0, %s256
      %s257 = sphi 0, %s254
      %s258 = sphi 0, %s257
      %s274 = sphi 0, %s258
    $region4: #{tpu_custom_call.1} parent=1 // loop_header_branch
      %22 = sbr.rel (%p20) target = $region8
    $region5: #{tpu_custom_call.1} parent=1 // loop_body
      %s24 = ssub.s32 %s19, 1
      %s25 = ssub.s32 %s19, 2
      %s26 = sadd.s32 %s19, 1
      %s27 = ssub.s32 %s19, %s26
      %p28 = scmp.eq.s32.totalorder %s27, 0
      %s30 = sadd.s32 %s29, 1
      %s31 = scalar_select %p28, %s29, %s30
      %p34 = pneg %p28
      %p35 = scmp.eq.s32.totalorder %s19, 1
      %p36 = por %p34, %p35
      %p37 = scmp.ne.s32.totalorder %s29, %s32
      %p38 = scmp.eq.s32.totalorder %s19, 0
      %p39 = por %p37, %p38
      %p40 = scmp.ne.s32.totalorder %s29, %s32
      %p41 = scmp.eq.s32.totalorder %s24, 1
      %p42 = por %p40, %p41
      %p43 = scmp.ne.s32.totalorder %s32, %s33
      %p44 = scmp.eq.s32.totalorder %s24, 0
      %p45 = por %p43, %p44
      %p46 = scmp.ne.s32.totalorder %s32, %s33
      %p47 = scmp.eq.s32.totalorder %s25, 1
      %p48 = por %p46, %p47
      %p50 = scmp.ne.s32.totalorder %s33, %s49
      %p51 = scmp.eq.s32.totalorder %s25, 0
      %p52 = por %p50, %p51
      %s53 = ssub.s32 %s19, %s26
      %p54 = scmp.eq.s32.totalorder %s53, 0
      %s56 = sadd.s32 %s55, 1
      %s57 = scalar_select %p54, %s55, %s56
      %p60 = pneg %p54
      %p61 = scmp.eq.s32.totalorder %s19, 1
      %p62 = por %p60, %p61
      %p63 = scmp.ne.s32.totalorder %s55, %s58
      %p64 = scmp.eq.s32.totalorder %s19, 0
      %p65 = por %p63, %p64
      %p66 = scmp.ne.s32.totalorder %s55, %s58
      %p67 = scmp.eq.s32.totalorder %s24, 1
      %p68 = por %p66, %p67
      %p69 = scmp.ne.s32.totalorder %s58, %s59
      %p70 = scmp.eq.s32.totalorder %s24, 0
      %p71 = por %p69, %p70
      %p72 = scmp.ne.s32.totalorder %s58, %s59
      %p73 = scmp.eq.s32.totalorder %s25, 1
      %p74 = por %p72, %p73
      %p76 = scmp.ne.s32.totalorder %s59, %s75
      %p77 = scmp.eq.s32.totalorder %s25, 0
      %p78 = por %p76, %p77
      %s79 = ssub.s32 %s19, %s26
      %p80 = scmp.eq.s32.totalorder %s79, 0
      %s82 = sadd.s32 %s81, 1
      %s83 = scalar_select %p80, %s81, %s82
      %p86 = pneg %p80
      %p87 = scmp.eq.s32.totalorder %s19, 1
      %p88 = por %p86, %p87
      %p89 = scmp.ne.s32.totalorder %s81, %s84
      %p90 = scmp.eq.s32.totalorder %s19, 0
      %p91 = por %p89, %p90
      %p92 = scmp.ne.s32.totalorder %s81, %s84
      %p93 = scmp.eq.s32.totalorder %s24, 1
      %p94 = por %p92, %p93
      %p95 = scmp.ne.s32.totalorder %s84, %s85
      %p96 = scmp.eq.s32.totalorder %s24, 0
      %p97 = por %p95, %p96
      %p98 = scmp.ne.s32.totalorder %s84, %s85
      %p99 = scmp.eq.s32.totalorder %s25, 1
      %p100 = por %p98, %p99
      %p102 = scmp.ne.s32.totalorder %s85, %s101
      %p103 = scmp.eq.s32.totalorder %s25, 0
      %p104 = por %p102, %p103
      %s106 = sadd.s32 %s105, 1
      %p109 = scmp.eq.s32.totalorder %s19, 1
      %p110 = scmp.ne.s32.totalorder %s105, %s107
      %p111 = scmp.eq.s32.totalorder %s19, 0
      %p112 = por %p110, %p111
      %p113 = scmp.ne.s32.totalorder %s105, %s107
      %p114 = scmp.eq.s32.totalorder %s24, 1
      %p115 = por %p113, %p114
      %p116 = scmp.ne.s32.totalorder %s107, %s108
      %p117 = scmp.eq.s32.totalorder %s24, 0
      %p118 = por %p116, %p117
      %p119 = scmp.ne.s32.totalorder %s107, %s108
      %p120 = scmp.eq.s32.totalorder %s25, 1
      %p121 = por %p119, %p120
      %p123 = scmp.ne.s32.totalorder %s108, %s122
      %p124 = scmp.eq.s32.totalorder %s25, 0
      %p125 = por %p123, %p124
      %s127 = sadd.s32 %s126, 1
      %p130 = scmp.eq.s32.totalorder %s19, 1
      %p131 = scmp.ne.s32.totalorder %s126, %s128
      %p132 = scmp.eq.s32.totalorder %s19, 0
      %p133 = por %p131, %p132
      %p134 = scmp.ne.s32.totalorder %s126, %s128
      %p135 = scmp.eq.s32.totalorder %s24, 1
      %p136 = por %p134, %p135
      %p137 = scmp.ne.s32.totalorder %s128, %s129
      %p138 = scmp.eq.s32.totalorder %s24, 0
      %p139 = por %p137, %p138
      %p140 = scmp.ne.s32.totalorder %s128, %s129
      %p141 = scmp.eq.s32.totalorder %s25, 1
      %p142 = por %p140, %p141
      %p144 = scmp.ne.s32.totalorder %s129, %s143
      %p145 = scmp.eq.s32.totalorder %s25, 0
      %p146 = por %p144, %p145
      %s148 = sadd.s32 %s147, 1
      %p151 = scmp.eq.s32.totalorder %s19, 1
      %p152 = scmp.ne.s32.totalorder %s147, %s149
      %p153 = scmp.eq.s32.totalorder %s19, 0
      %p154 = por %p152, %p153
      %p155 = scmp.ne.s32.totalorder %s147, %s149
      %p156 = scmp.eq.s32.totalorder %s24, 1
      %p157 = por %p155, %p156
      %p158 = scmp.ne.s32.totalorder %s149, %s150
      %p159 = scmp.eq.s32.totalorder %s24, 0
      %p160 = por %p158, %p159
      %p161 = scmp.ne.s32.totalorder %s149, %s150
      %p162 = scmp.eq.s32.totalorder %s25, 1
      %p163 = por %p161, %p162
      %p165 = scmp.ne.s32.totalorder %s150, %s164
      %p166 = scmp.eq.s32.totalorder %s25, 0
      %p167 = por %p165, %p166
      %s169 = sadd.s32 %s168, 1
      %p172 = scmp.eq.s32.totalorder %s19, 1
      %p173 = scmp.ne.s32.totalorder %s168, %s170
      %p174 = scmp.eq.s32.totalorder %s19, 0
      %p175 = por %p173, %p174
      %p176 = scmp.ne.s32.totalorder %s168, %s170
      %p177 = scmp.eq.s32.totalorder %s24, 1
      %p178 = por %p176, %p177
      %p179 = scmp.ne.s32.totalorder %s170, %s171
      %p180 = scmp.eq.s32.totalorder %s24, 0
      %p181 = por %p179, %p180
      %p182 = scmp.ne.s32.totalorder %s170, %s171
      %p183 = scmp.eq.s32.totalorder %s25, 1
      %p184 = por %p182, %p183
      %p186 = scmp.ne.s32.totalorder %s171, %s185
      %p187 = scmp.eq.s32.totalorder %s25, 0
      %p188 = por %p186, %p187
      %s190 = sadd.s32 %s189, 1
      %p193 = scmp.eq.s32.totalorder %s19, 1
      %p194 = scmp.ne.s32.totalorder %s189, %s191
      %p195 = scmp.eq.s32.totalorder %s19, 0
      %p196 = por %p194, %p195
      %p197 = scmp.ne.s32.totalorder %s189, %s191
      %p198 = scmp.eq.s32.totalorder %s24, 1
      %p199 = por %p197, %p198
      %p200 = scmp.ne.s32.totalorder %s191, %s192
      %p201 = scmp.eq.s32.totalorder %s24, 0
      %p202 = por %p200, %p201
      %p203 = scmp.ne.s32.totalorder %s191, %s192
      %p204 = scmp.eq.s32.totalorder %s25, 1
      %p205 = por %p203, %p204
      %p207 = scmp.ne.s32.totalorder %s192, %s206
      %p208 = scmp.eq.s32.totalorder %s25, 0
      %p209 = por %p207, %p208
      %s211 = sadd.s32 %s210, 1
      %p214 = scmp.eq.s32.totalorder %s19, 1
      %p215 = scmp.ne.s32.totalorder %s210, %s212
      %p216 = scmp.eq.s32.totalorder %s19, 0
      %p217 = por %p215, %p216
      %p218 = scmp.ne.s32.totalorder %s210, %s212
      %p219 = scmp.eq.s32.totalorder %s24, 1
      %p220 = por %p218, %p219
      %p221 = scmp.ne.s32.totalorder %s212, %s213
      %p222 = scmp.eq.s32.totalorder %s24, 0
      %p223 = por %p221, %p222
      %p224 = scmp.ne.s32.totalorder %s212, %s213
      %p225 = scmp.eq.s32.totalorder %s25, 1
      %p226 = por %p224, %p225
      %p228 = scmp.ne.s32.totalorder %s213, %s227
      %p229 = scmp.eq.s32.totalorder %s25, 0
      %p230 = por %p228, %p229
      %s232 = sadd.s32 %s231, 1
      %p235 = scmp.eq.s32.totalorder %s19, 1
      %p236 = scmp.ne.s32.totalorder %s231, %s233
      %p237 = scmp.eq.s32.totalorder %s19, 0
      %p238 = por %p236, %p237
      %p239 = scmp.ne.s32.totalorder %s231, %s233
      %p240 = scmp.eq.s32.totalorder %s24, 1
      %p241 = por %p239, %p240
      %p242 = scmp.ne.s32.totalorder %s233, %s234
      %p243 = scmp.eq.s32.totalorder %s24, 0
      %p244 = por %p242, %p243
      %p245 = scmp.ne.s32.totalorder %s233, %s234
      %p246 = scmp.eq.s32.totalorder %s25, 1
      %p247 = por %p245, %p246
      %p249 = scmp.ne.s32.totalorder %s234, %s248
      %p250 = scmp.eq.s32.totalorder %s25, 0
      %p251 = por %p249, %p250
      %s252 = ssub.s32 %s19, %s26
      %p253 = scmp.eq.s32.totalorder %s252, 0
      %s255 = sadd.s32 %s254, 1
      %s256 = scalar_select %p253, %s254, %s255
      %p259 = pneg %p253
      %p260 = scmp.eq.s32.totalorder %s19, 1
      %p261 = por %p259, %p260
      %p262 = scmp.ne.s32.totalorder %s254, %s257
      %p263 = scmp.eq.s32.totalorder %s19, 0
      %p264 = por %p262, %p263
      %p265 = scmp.ne.s32.totalorder %s254, %s257
      %p266 = scmp.eq.s32.totalorder %s24, 1
      %p267 = por %p265, %p266
      %p268 = scmp.ne.s32.totalorder %s257, %s258
      %p269 = scmp.eq.s32.totalorder %s24, 0
      %p270 = por %p268, %p269
      %p271 = scmp.ne.s32.totalorder %s257, %s258
      %p272 = scmp.eq.s32.totalorder %s25, 1
      %p273 = por %p271, %p272
      %p275 = scmp.ne.s32.totalorder %s258, %s274
      %p276 = scmp.eq.s32.totalorder %s25, 0
      %p277 = por %p275, %p276
      %p278 = scmp.le.s32.totalorder 1, %s19
      %p279 = scmp.lt.s32.totalorder %s19, 3
      %p280 = pnand %p278, %p279
      %p281 = pneg %p280
      // Predicated region
      $region9: #{tpu_custom_call.1} parent=5 // pred_check
        _
      $region10: #{tpu_custom_call.1} parent=5 // pred_check_branch
        %283 = sbr.rel (%p280) target = $region12
      $region11: #{tpu_custom_call.1} parent=5 // pred_region
        %s284 = ssub.s32 %s19, 1
        // Predicated region
        $region13: #{tpu_custom_call.1} parent=11 // pred_check
          %p285 = pneg %p118
        $region14: #{tpu_custom_call.1} parent=11 // pred_check_branch
          %287 = sbr.rel (%p285) target = $region16
        $region15: #{tpu_custom_call.1} parent=11 // pred_region
          _
        $region16: #{tpu_custom_call.1} parent=11 // pred_fallthru
          _
        // Predicated region
        $region17: #{tpu_custom_call.1} parent=11 // pred_check
          %p288 = pneg %p139
        $region18: #{tpu_custom_call.1} parent=11 // pred_check_branch
          %290 = sbr.rel (%p288) target = $region20
        $region19: #{tpu_custom_call.1} parent=11 // pred_region
          _
        $region20: #{tpu_custom_call.1} parent=11 // pred_fallthru
          _
        // Predicated region
        $region21: #{tpu_custom_call.1} parent=11 // pred_check
          %p291 = pneg %p160
        $region22: #{tpu_custom_call.1} parent=11 // pred_check_branch
          %293 = sbr.rel (%p291) target = $region24
        $region23: #{tpu_custom_call.1} parent=11 // pred_region
          _
        $region24: #{tpu_custom_call.1} parent=11 // pred_fallthru
          _
        // Predicated region
        $region25: #{tpu_custom_call.1} parent=11 // pred_check
          %p294 = pneg %p181
        $region26: #{tpu_custom_call.1} parent=11 // pred_check_branch
          %296 = sbr.rel (%p294) target = $region28
        $region27: #{tpu_custom_call.1} parent=11 // pred_region
          _
        $region28: #{tpu_custom_call.1} parent=11 // pred_fallthru
          _
        // Predicated region
        $region29: #{tpu_custom_call.1} parent=11 // pred_check
          %p297 = pneg %p202
        $region30: #{tpu_custom_call.1} parent=11 // pred_check_branch
          %299 = sbr.rel (%p297) target = $region32
        $region31: #{tpu_custom_call.1} parent=11 // pred_region
          _
        $region32: #{tpu_custom_call.1} parent=11 // pred_fallthru
          _
        // Predicated region
        $region33: #{tpu_custom_call.1} parent=11 // pred_check
          %p300 = pneg %p223
        $region34: #{tpu_custom_call.1} parent=11 // pred_check_branch
          %302 = sbr.rel (%p300) target = $region36
        $region35: #{tpu_custom_call.1} parent=11 // pred_region
          _
        $region36: #{tpu_custom_call.1} parent=11 // pred_fallthru
          _
        // Predicated region
        $region37: #{tpu_custom_call.1} parent=11 // pred_check
          %p303 = pneg %p244
        $region38: #{tpu_custom_call.1} parent=11 // pred_check_branch
          %305 = sbr.rel (%p303) target = $region40
        $region39: #{tpu_custom_call.1} parent=11 // pred_region
          _
        $region40: #{tpu_custom_call.1} parent=11 // pred_fallthru
          _
      $region12: #{tpu_custom_call.1} parent=5 // pred_fallthru
        _
      %p306 = scmp.lt.s32.totalorder %s19, 2
      // Predicated region
      $region41: #{tpu_custom_call.1} parent=5 // pred_check
        %p307 = pneg %p306
      $region42: #{tpu_custom_call.1} parent=5 // pred_check_branch
        %309 = sbr.rel (%p307) target = $region44
      $region43: #{tpu_custom_call.1} parent=5 // pred_region
        // Predicated region
        $region45: #{tpu_custom_call.1} parent=43 // pred_check
          %p310 = pneg %p39
        $region46: #{tpu_custom_call.1} parent=43 // pred_check_branch
          %312 = sbr.rel (%p310) target = $region48
        $region47: #{tpu_custom_call.1} parent=43 // pred_region
          %s313 = smul.u32 16, %s19
          %p314 = scmp.lt.s32.totalorder %s313, 31
          %s315 = scalar_select %p314, %s313, 31
          %s316 = smul.addr %s315, 8
          %s317 = scalar_lea.vmem %s0, %s316
          %s318 = smul.u32 16, %s19
        $region48: #{tpu_custom_call.1} parent=43 // pred_fallthru
          _
        // Predicated region
        $region49: #{tpu_custom_call.1} parent=43 // pred_check
          %p319 = pneg %p65
        $region50: #{tpu_custom_call.1} parent=43 // pred_check_branch
          %321 = sbr.rel (%p319) target = $region52
        $region51: #{tpu_custom_call.1} parent=43 // pred_region
          %s322 = smul.u32 16, %s19
          %p323 = scmp.lt.s32.totalorder %s322, 31
          %s324 = scalar_select %p323, %s322, 31
          %s325 = smul.addr %s324, 8
          %s326 = scalar_lea.vmem %s1, %s325
          %s327 = smul.u32 16, %s19
        $region52: #{tpu_custom_call.1} parent=43 // pred_fallthru
          _
        // Predicated region
        $region53: #{tpu_custom_call.1} parent=43 // pred_check
          %p328 = pneg %p91
        $region54: #{tpu_custom_call.1} parent=43 // pred_check_branch
          %330 = sbr.rel (%p328) target = $region56
        $region55: #{tpu_custom_call.1} parent=43 // pred_region
          %s331 = smul.u32 16, %s19
          %p332 = scmp.lt.s32.totalorder %s331, 31
          %s333 = scalar_select %p332, %s331, 31
          %s334 = smul.addr %s333, 8
          %s335 = scalar_lea.vmem %s2, %s334
          %s336 = smul.u32 16, %s19
        $region56: #{tpu_custom_call.1} parent=43 // pred_fallthru
          _
      $region44: #{tpu_custom_call.1} parent=5 // pred_fallthru
        _
      %p337 = scmp.le.s32.totalorder 1, %s19
      %p338 = scmp.lt.s32.totalorder %s19, 3
      %p339 = pnand %p337, %p338
      %p340 = pneg %p339
      // Predicated region
      $region57: #{tpu_custom_call.1} parent=5 // pred_check
        _
      $region58: #{tpu_custom_call.1} parent=5 // pred_check_branch
        %342 = sbr.rel (%p339) target = $region60
      $region59: #{tpu_custom_call.1} parent=5 // pred_region
        %s343 = ssub.s32 %s19, 1
        %s344 = smul.u32 16, %s24
        %p345 = scmp.lt.s32.totalorder %s344, 31
        %s346 = scalar_select %p345, %s344, 31
        %s347 = smul.addr %s346, 8
        %s348 = scalar_lea.vmem %s0, %s347
        %p349 = pneg %p45
        %p350 = pneg %p42
        %s351 = smul.u32 16, %s24
        %p352 = scmp.lt.s32.totalorder %s351, 31
        %s353 = scalar_select %p352, %s351, 31
        %s354 = smul.addr %s353, 8
        %s355 = scalar_lea.vmem %s1, %s354
        %p356 = pneg %p71
        %p357 = pneg %p68
        %s358 = smul.u32 16, %s24
        %p359 = scmp.lt.s32.totalorder %s358, 31
        %s360 = scalar_select %p359, %s358, 31
        %s361 = smul.addr %s360, 8
        %s362 = scalar_lea.vmem %s2, %s361
        %p363 = pneg %p97
        %p364 = pneg %p94
        %p365 = pneg %p118
        %p366 = pneg %p115
        %p367 = pneg %p139
        %p368 = pneg %p136
        %p369 = pneg %p160
        %p370 = pneg %p157
        %p371 = pneg %p181
        %p372 = pneg %p178
        %p373 = pneg %p202
        %p374 = pneg %p199
        %p375 = pneg %p223
        %p376 = pneg %p220
        %p377 = pneg %p244
        %p378 = pneg %p241
        %p379 = pneg %p270
        %p380 = pneg %p267
        %s381 = sand.u32 %s257, 1
        %s382 = scalar_lea.sflag [#allocation3], %s381
        %s383 = sand.u32 %s257, 1
        %s384 = smul.addr %s383, 128
        %s385 = scalar_lea.vmem [#allocation2], %s384
        %s386 = smul.u32 16, %s24
        %p387 = scmp.lt.s32.totalorder %s386, 31
        %s388 = scalar_select %p387, %s386, 31
        %s389 = smul.addr %s388, 8
        %s390 = scalar_lea.vmem %s0, %s389
        %s391 = smul.u32 16, %s24
        %s392 = smul.u32 16, %s24
        %p393 = scmp.lt.s32.totalorder %s392, 31
        %s394 = scalar_select %p393, %s392, 31
        %s395 = smul.addr %s394, 8
        %s396 = scalar_lea.vmem %s1, %s395
        %s397 = smul.u32 16, %s24
        %s398 = smul.u32 16, %s24
        %p399 = scmp.lt.s32.totalorder %s398, 31
        %s400 = scalar_select %p399, %s398, 31
        %s401 = smul.addr %s400, 8
        %s402 = scalar_lea.vmem %s2, %s401
        %s403 = smul.u32 16, %s24
        %s404 = smul.u32 16, %s24
        %v406 = vld [vmem:[%s390] sm:$0xff]
        %v407 = vld [vmem:[%s390 + $0x8] sm:$0xff]
        %v408 = vld [vmem:[%s390 + $0x10] sm:$0xff]
        %v409 = vld [vmem:[%s390 + $0x18] sm:$0xff]
        %v410 = vld [vmem:[%s390 + $0x20] sm:$0xff]
        %v411 = vld [vmem:[%s390 + $0x28] sm:$0xff]
        %v412 = vld [vmem:[%s390 + $0x30] sm:$0xff]
        %v413 = vld [vmem:[%s390 + $0x38] sm:$0xff]
        %v414 = vld [vmem:[%s390 + $0x40] sm:$0xff]
        %v415 = vld [vmem:[%s390 + $0x48] sm:$0xff]
        %v416 = vld [vmem:[%s390 + $0x50] sm:$0xff]
        %v417 = vld [vmem:[%s390 + $0x58] sm:$0xff]
        %v418 = vld [vmem:[%s390 + $0x60] sm:$0xff]
        %v419 = vld [vmem:[%s390 + $0x68] sm:$0xff]
        %v420 = vld [vmem:[%s390 + $0x70] sm:$0xff]
        %v421 = vld [vmem:[%s390 + $0x78] sm:$0xff]
        %v422 = vld [vmem:[%s396] sm:$0xff]
        %v423 = vld [vmem:[%s396 + $0x8] sm:$0xff]
        %v424 = vld [vmem:[%s396 + $0x10] sm:$0xff]
        %v425 = vld [vmem:[%s396 + $0x18] sm:$0xff]
        %v426 = vld [vmem:[%s396 + $0x20] sm:$0xff]
        %v427 = vld [vmem:[%s396 + $0x28] sm:$0xff]
        %v428 = vld [vmem:[%s396 + $0x30] sm:$0xff]
        %v429 = vld [vmem:[%s396 + $0x38] sm:$0xff]
        %v430 = vld [vmem:[%s396 + $0x40] sm:$0xff]
        %v431 = vld [vmem:[%s396 + $0x48] sm:$0xff]
        %v432 = vld [vmem:[%s396 + $0x50] sm:$0xff]
        %v433 = vld [vmem:[%s396 + $0x58] sm:$0xff]
        %v434 = vld [vmem:[%s396 + $0x60] sm:$0xff]
        %v435 = vld [vmem:[%s396 + $0x68] sm:$0xff]
        %v436 = vld [vmem:[%s396 + $0x70] sm:$0xff]
        %v437 = vld [vmem:[%s396 + $0x78] sm:$0xff]
        %v438 = vlaneseq
        %v439 = vand.u32 %v438, 127
        %440 = vset.pattern.permute.xlu0 0
        %441 = vperm.xlu0 %440, %v406
        %v442 = vpop.permute.xlu0 %441
        %443 = vset.pattern.permute.xlu0 0
        %444 = vperm.xlu0 %443, %v407
        %v445 = vpop.permute.xlu0 %444
        %446 = vset.pattern.permute.xlu0 0
        %447 = vperm.xlu0 %446, %v408
        %v448 = vpop.permute.xlu0 %447
        %449 = vset.pattern.permute.xlu0 0
        %450 = vperm.xlu0 %449, %v409
        %v451 = vpop.permute.xlu0 %450
        %452 = vset.pattern.permute.xlu0 0
        %453 = vperm.xlu0 %452, %v410
        %v454 = vpop.permute.xlu0 %453
        %455 = vset.pattern.permute.xlu0 0
        %456 = vperm.xlu0 %455, %v411
        %v457 = vpop.permute.xlu0 %456
        %458 = vset.pattern.permute.xlu0 0
        %459 = vperm.xlu0 %458, %v412
        %v460 = vpop.permute.xlu0 %459
        %461 = vset.pattern.permute.xlu0 0
        %462 = vperm.xlu0 %461, %v413
        %v463 = vpop.permute.xlu0 %462
        %464 = vset.pattern.permute.xlu0 0
        %465 = vperm.xlu0 %464, %v414
        %v466 = vpop.permute.xlu0 %465
        %467 = vset.pattern.permute.xlu0 0
        %468 = vperm.xlu0 %467, %v415
        %v469 = vpop.permute.xlu0 %468
        %470 = vset.pattern.permute.xlu0 0
        %471 = vperm.xlu0 %470, %v416
        %v472 = vpop.permute.xlu0 %471
        %473 = vset.pattern.permute.xlu0 0
        %474 = vperm.xlu0 %473, %v417
        %v475 = vpop.permute.xlu0 %474
        %476 = vset.pattern.permute.xlu0 0
        %477 = vperm.xlu0 %476, %v418
        %v478 = vpop.permute.xlu0 %477
        %479 = vset.pattern.permute.xlu0 0
        %480 = vperm.xlu0 %479, %v419
        %v481 = vpop.permute.xlu0 %480
        %482 = vset.pattern.permute.xlu0 0
        %483 = vperm.xlu0 %482, %v420
        %v484 = vpop.permute.xlu0 %483
        %485 = vset.pattern.permute.xlu0 0
        %486 = vperm.xlu0 %485, %v421
        %v487 = vpop.permute.xlu0 %486
        %vm488 = vcmp.eq.s32.totalorder %v442, %v439
        %vm489 = vcmp.eq.s32.totalorder %v445, %v439
        %vm490 = vcmp.eq.s32.totalorder %v448, %v439
        %vm491 = vcmp.eq.s32.totalorder %v451, %v439
        %vm492 = vcmp.eq.s32.totalorder %v454, %v439
        %vm493 = vcmp.eq.s32.totalorder %v457, %v439
        %vm494 = vcmp.eq.s32.totalorder %v460, %v439
        %vm495 = vcmp.eq.s32.totalorder %v463, %v439
        %vm496 = vcmp.eq.s32.totalorder %v466, %v439
        %vm497 = vcmp.eq.s32.totalorder %v469, %v439
        %vm498 = vcmp.eq.s32.totalorder %v472, %v439
        %vm499 = vcmp.eq.s32.totalorder %v475, %v439
        %vm500 = vcmp.eq.s32.totalorder %v478, %v439
        %vm501 = vcmp.eq.s32.totalorder %v481, %v439
        %vm502 = vcmp.eq.s32.totalorder %v484, %v439
        %vm503 = vcmp.eq.s32.totalorder %v487, %v439
        %505 = vset.pattern.permute.xlu0 0
        %506 = vperm.xlu0 %505, %v422
        %v507 = vpop.permute.xlu0 %506
        %510 = vset.pattern.permute.xlu0 0
        %511 = vperm.xlu0 %510, %v423
        %v512 = vpop.permute.xlu0 %511
        %515 = vset.pattern.permute.xlu0 0
        %516 = vperm.xlu0 %515, %v424
        %v517 = vpop.permute.xlu0 %516
        %520 = vset.pattern.permute.xlu0 0
        %521 = vperm.xlu0 %520, %v425
        %v522 = vpop.permute.xlu0 %521
        %525 = vset.pattern.permute.xlu0 0
        %526 = vperm.xlu0 %525, %v426
        %v527 = vpop.permute.xlu0 %526
        %530 = vset.pattern.permute.xlu0 0
        %531 = vperm.xlu0 %530, %v427
        %v532 = vpop.permute.xlu0 %531
        %535 = vset.pattern.permute.xlu0 0
        %536 = vperm.xlu0 %535, %v428
        %v537 = vpop.permute.xlu0 %536
        %540 = vset.pattern.permute.xlu0 0
        %541 = vperm.xlu0 %540, %v429
        %v542 = vpop.permute.xlu0 %541
        %545 = vset.pattern.permute.xlu0 0
        %546 = vperm.xlu0 %545, %v430
        %v547 = vpop.permute.xlu0 %546
        %550 = vset.pattern.permute.xlu0 0
        %551 = vperm.xlu0 %550, %v431
        %v552 = vpop.permute.xlu0 %551
        %555 = vset.pattern.permute.xlu0 0
        %556 = vperm.xlu0 %555, %v432
        %v557 = vpop.permute.xlu0 %556
        %560 = vset.pattern.permute.xlu0 0
        %561 = vperm.xlu0 %560, %v433
        %v562 = vpop.permute.xlu0 %561
        %565 = vset.pattern.permute.xlu0 0
        %566 = vperm.xlu0 %565, %v434
        %v567 = vpop.permute.xlu0 %566
        %570 = vset.pattern.permute.xlu0 0
        %571 = vperm.xlu0 %570, %v435
        %v572 = vpop.permute.xlu0 %571
        %575 = vset.pattern.permute.xlu0 0
        %576 = vperm.xlu0 %575, %v436
        %v577 = vpop.permute.xlu0 %576
        %580 = vset.pattern.permute.xlu0 0
        %581 = vperm.xlu0 %580, %v437
        %v582 = vpop.permute.xlu0 %581
        %v584 = vsel %vm488, %v507, 0.0
        %v585 = vsel %vm489, %v512, 0.0
        %v586 = vsel %vm490, %v517, 0.0
        %v587 = vsel %vm491, %v522, 0.0
        %v588 = vsel %vm492, %v527, 0.0
        %v589 = vsel %vm493, %v532, 0.0
        %v590 = vsel %vm494, %v537, 0.0
        %v591 = vsel %vm495, %v542, 0.0
        %v592 = vsel %vm496, %v547, 0.0
        %v593 = vsel %vm497, %v552, 0.0
        %v594 = vsel %vm498, %v557, 0.0
        %v595 = vsel %vm499, %v562, 0.0
        %v596 = vsel %vm500, %v567, 0.0
        %v597 = vsel %vm501, %v572, 0.0
        %v598 = vsel %vm502, %v577, 0.0
        %v599 = vsel %vm503, %v582, 0.0
        %v600 = vadd.f32 %v584, 0.0
        %v601 = vadd.f32 %v585, 0.0
        %v602 = vadd.f32 %v586, 0.0
        %v603 = vadd.f32 %v587, 0.0
        %v604 = vadd.f32 %v588, 0.0
        %v605 = vadd.f32 %v589, 0.0
        %v606 = vadd.f32 %v590, 0.0
        %v607 = vadd.f32 %v591, 0.0
        %v608 = vadd.f32 %v592, 0.0
        %v609 = vadd.f32 %v593, 0.0
        %v610 = vadd.f32 %v594, 0.0
        %v611 = vadd.f32 %v595, 0.0
        %v612 = vadd.f32 %v596, 0.0
        %v613 = vadd.f32 %v597, 0.0
        %v614 = vadd.f32 %v598, 0.0
        %v615 = vadd.f32 %v599, 0.0
        %616 = vset.pattern.permute.xlu0 1
        %617 = vperm.xlu0 %616, %v406
        %v618 = vpop.permute.xlu0 %617
        %619 = vset.pattern.permute.xlu0 1
        %620 = vperm.xlu0 %619, %v407
        %v621 = vpop.permute.xlu0 %620
        %622 = vset.pattern.permute.xlu0 1
        %623 = vperm.xlu0 %622, %v408
        %v624 = vpop.permute.xlu0 %623
        %625 = vset.pattern.permute.xlu0 1
        %626 = vperm.xlu0 %625, %v409
        %v627 = vpop.permute.xlu0 %626
        %628 = vset.pattern.permute.xlu0 1
        %629 = vperm.xlu0 %628, %v410
        %v630 = vpop.permute.xlu0 %629
        %631 = vset.pattern.permute.xlu0 1
        %632 = vperm.xlu0 %631, %v411
        %v633 = vpop.permute.xlu0 %632
        %634 = vset.pattern.permute.xlu0 1
        %635 = vperm.xlu0 %634, %v412
        %v636 = vpop.permute.xlu0 %635
        %637 = vset.pattern.permute.xlu0 1
        %638 = vperm.xlu0 %637, %v413
        %v639 = vpop.permute.xlu0 %638
        %640 = vset.pattern.permute.xlu0 1
        %641 = vperm.xlu0 %640, %v414
        %v642 = vpop.permute.xlu0 %641
        %643 = vset.pattern.permute.xlu0 1
        %644 = vperm.xlu0 %643, %v415
        %v645 = vpop.permute.xlu0 %644
        %646 = vset.pattern.permute.xlu0 1
        %647 = vperm.xlu0 %646, %v416
        %v648 = vpop.permute.xlu0 %647
        %649 = vset.pattern.permute.xlu0 1
        %650 = vperm.xlu0 %649, %v417
        %v651 = vpop.permute.xlu0 %650
        %652 = vset.pattern.permute.xlu0 1
        %653 = vperm.xlu0 %652, %v418
        %v654 = vpop.permute.xlu0 %653
        %655 = vset.pattern.permute.xlu0 1
        %656 = vperm.xlu0 %655, %v419
        %v657 = vpop.permute.xlu0 %656
        %658 = vset.pattern.permute.xlu0 1
        %659 = vperm.xlu0 %658, %v420
        %v660 = vpop.permute.xlu0 %659
        %661 = vset.pattern.permute.xlu0 1
        %662 = vperm.xlu0 %661, %v421
        %v663 = vpop.permute.xlu0 %662
        %vm664 = vcmp.eq.s32.totalorder %v618, %v439
        %vm665 = vcmp.eq.s32.totalorder %v621, %v439
        %vm666 = vcmp.eq.s32.totalorder %v624, %v439
        %vm667 = vcmp.eq.s32.totalorder %v627, %v439
        %vm668 = vcmp.eq.s32.totalorder %v630, %v439
        %vm669 = vcmp.eq.s32.totalorder %v633, %v439
        %vm670 = vcmp.eq.s32.totalorder %v636, %v439
        %vm671 = vcmp.eq.s32.totalorder %v639, %v439
        %vm672 = vcmp.eq.s32.totalorder %v642, %v439
        %vm673 = vcmp.eq.s32.totalorder %v645, %v439
        %vm674 = vcmp.eq.s32.totalorder %v648, %v439
        %vm675 = vcmp.eq.s32.totalorder %v651, %v439
        %vm676 = vcmp.eq.s32.totalorder %v654, %v439
        %vm677 = vcmp.eq.s32.totalorder %v657, %v439
        %vm678 = vcmp.eq.s32.totalorder %v660, %v439
        %vm679 = vcmp.eq.s32.totalorder %v663, %v439
        %680 = vset.pattern.permute.xlu0 1
        %681 = vperm.xlu0 %680, %v422
        %v682 = vpop.permute.xlu0 %681
        %684 = vset.pattern.permute.xlu0 1
        %685 = vperm.xlu0 %684, %v423
        %v686 = vpop.permute.xlu0 %685
        %688 = vset.pattern.permute.xlu0 1
        %689 = vperm.xlu0 %688, %v424
        %v690 = vpop.permute.xlu0 %689
        %692 = vset.pattern.permute.xlu0 1
        %693 = vperm.xlu0 %692, %v425
        %v694 = vpop.permute.xlu0 %693
        %696 = vset.pattern.permute.xlu0 1
        %697 = vperm.xlu0 %696, %v426
        %v698 = vpop.permute.xlu0 %697
        %700 = vset.pattern.permute.xlu0 1
        %701 = vperm.xlu0 %700, %v427
        %v702 = vpop.permute.xlu0 %701
        %704 = vset.pattern.permute.xlu0 1
        %705 = vperm.xlu0 %704, %v428
        %v706 = vpop.permute.xlu0 %705
        %708 = vset.pattern.permute.xlu0 1
        %709 = vperm.xlu0 %708, %v429
        %v710 = vpop.permute.xlu0 %709
        %712 = vset.pattern.permute.xlu0 1
        %713 = vperm.xlu0 %712, %v430
        %v714 = vpop.permute.xlu0 %713
        %716 = vset.pattern.permute.xlu0 1
        %717 = vperm.xlu0 %716, %v431
        %v718 = vpop.permute.xlu0 %717
        %720 = vset.pattern.permute.xlu0 1
        %721 = vperm.xlu0 %720, %v432
        %v722 = vpop.permute.xlu0 %721
        %724 = vset.pattern.permute.xlu0 1
        %725 = vperm.xlu0 %724, %v433
        %v726 = vpop.permute.xlu0 %725
        %728 = vset.pattern.permute.xlu0 1
        %729 = vperm.xlu0 %728, %v434
        %v730 = vpop.permute.xlu0 %729
        %732 = vset.pattern.permute.xlu0 1
        %733 = vperm.xlu0 %732, %v435
        %v734 = vpop.permute.xlu0 %733
        %736 = vset.pattern.permute.xlu0 1
        %737 = vperm.xlu0 %736, %v436
        %v738 = vpop.permute.xlu0 %737
        %740 = vset.pattern.permute.xlu0 1
        %741 = vperm.xlu0 %740, %v437
        %v742 = vpop.permute.xlu0 %741
        %v744 = vsel %vm664, %v682, 0.0
        %v745 = vsel %vm665, %v686, 0.0
        %v746 = vsel %vm666, %v690, 0.0
        %v747 = vsel %vm667, %v694, 0.0
        %v748 = vsel %vm668, %v698, 0.0
        %v749 = vsel %vm669, %v702, 0.0
        %v750 = vsel %vm670, %v706, 0.0
        %v751 = vsel %vm671, %v710, 0.0
        %v752 = vsel %vm672, %v714, 0.0
        %v753 = vsel %vm673, %v718, 0.0
        %v754 = vsel %vm674, %v722, 0.0
        %v755 = vsel %vm675, %v726, 0.0
        %v756 = vsel %vm676, %v730, 0.0
        %v757 = vsel %vm677, %v734, 0.0
        %v758 = vsel %vm678, %v738, 0.0
        %v759 = vsel %vm679, %v742, 0.0
        %v760 = vadd.f32 %v600, %v744
        %v761 = vadd.f32 %v601, %v745
        %v762 = vadd.f32 %v602, %v746
        %v763 = vadd.f32 %v603, %v747
        %v764 = vadd.f32 %v604, %v748
        %v765 = vadd.f32 %v605, %v749
        %v766 = vadd.f32 %v606, %v750
        %v767 = vadd.f32 %v607, %v751
        %v768 = vadd.f32 %v608, %v752
        %v769 = vadd.f32 %v609, %v753
        %v770 = vadd.f32 %v610, %v754
        %v771 = vadd.f32 %v611, %v755
        %v772 = vadd.f32 %v612, %v756
        %v773 = vadd.f32 %v613, %v757
        %v774 = vadd.f32 %v614, %v758
        %v775 = vadd.f32 %v615, %v759
        %776 = vset.pattern.permute.xlu0 2
        %777 = vperm.xlu0 %776, %v406
        %v778 = vpop.permute.xlu0 %777
        %779 = vset.pattern.permute.xlu0 2
        %780 = vperm.xlu0 %779, %v407
        %v781 = vpop.permute.xlu0 %780
        %782 = vset.pattern.permute.xlu0 2
        %783 = vperm.xlu0 %782, %v408
        %v784 = vpop.permute.xlu0 %783
        %785 = vset.pattern.permute.xlu0 2
        %786 = vperm.xlu0 %785, %v409
        %v787 = vpop.permute.xlu0 %786
        %788 = vset.pattern.permute.xlu0 2
        %789 = vperm.xlu0 %788, %v410
        %v790 = vpop.permute.xlu0 %789
        %791 = vset.pattern.permute.xlu0 2
        %792 = vperm.xlu0 %791, %v411
        %v793 = vpop.permute.xlu0 %792
        %794 = vset.pattern.permute.xlu0 2
        %795 = vperm.xlu0 %794, %v412
        %v796 = vpop.permute.xlu0 %795
        %797 = vset.pattern.permute.xlu0 2
        %798 = vperm.xlu0 %797, %v413
        %v799 = vpop.permute.xlu0 %798
        %800 = vset.pattern.permute.xlu0 2
        %801 = vperm.xlu0 %800, %v414
        %v802 = vpop.permute.xlu0 %801
        %803 = vset.pattern.permute.xlu0 2
        %804 = vperm.xlu0 %803, %v415
        %v805 = vpop.permute.xlu0 %804
        %806 = vset.pattern.permute.xlu0 2
        %807 = vperm.xlu0 %806, %v416
        %v808 = vpop.permute.xlu0 %807
        %809 = vset.pattern.permute.xlu0 2
        %810 = vperm.xlu0 %809, %v417
        %v811 = vpop.permute.xlu0 %810
        %812 = vset.pattern.permute.xlu0 2
        %813 = vperm.xlu0 %812, %v418
        %v814 = vpop.permute.xlu0 %813
        %815 = vset.pattern.permute.xlu0 2
        %816 = vperm.xlu0 %815, %v419
        %v817 = vpop.permute.xlu0 %816
        %818 = vset.pattern.permute.xlu0 2
        %819 = vperm.xlu0 %818, %v420
        %v820 = vpop.permute.xlu0 %819
        %821 = vset.pattern.permute.xlu0 2
        %822 = vperm.xlu0 %821, %v421
        %v823 = vpop.permute.xlu0 %822
        %vm824 = vcmp.eq.s32.totalorder %v778, %v439
        %vm825 = vcmp.eq.s32.totalorder %v781, %v439
        %vm826 = vcmp.eq.s32.totalorder %v784, %v439
        %vm827 = vcmp.eq.s32.totalorder %v787, %v439
        %vm828 = vcmp.eq.s32.totalorder %v790, %v439
        %vm829 = vcmp.eq.s32.totalorder %v793, %v439
        %vm830 = vcmp.eq.s32.totalorder %v796, %v439
        %vm831 = vcmp.eq.s32.totalorder %v799, %v439
        %vm832 = vcmp.eq.s32.totalorder %v802, %v439
        %vm833 = vcmp.eq.s32.totalorder %v805, %v439
        %vm834 = vcmp.eq.s32.totalorder %v808, %v439
        %vm835 = vcmp.eq.s32.totalorder %v811, %v439
        %vm836 = vcmp.eq.s32.totalorder %v814, %v439
        %vm837 = vcmp.eq.s32.totalorder %v817, %v439
        %vm838 = vcmp.eq.s32.totalorder %v820, %v439
        %vm839 = vcmp.eq.s32.totalorder %v823, %v439
        %840 = vset.pattern.permute.xlu0 2
        %841 = vperm.xlu0 %840, %v422
        %v842 = vpop.permute.xlu0 %841
        %844 = vset.pattern.permute.xlu0 2
        %845 = vperm.xlu0 %844, %v423
        %v846 = vpop.permute.xlu0 %845
        %848 = vset.pattern.permute.xlu0 2
        %849 = vperm.xlu0 %848, %v424
        %v850 = vpop.permute.xlu0 %849
        %852 = vset.pattern.permute.xlu0 2
        %853 = vperm.xlu0 %852, %v425
        %v854 = vpop.permute.xlu0 %853
        %856 = vset.pattern.permute.xlu0 2
        %857 = vperm.xlu0 %856, %v426
        %v858 = vpop.permute.xlu0 %857
        %860 = vset.pattern.permute.xlu0 2
        %861 = vperm.xlu0 %860, %v427
        %v862 = vpop.permute.xlu0 %861
        %864 = vset.pattern.permute.xlu0 2
        %865 = vperm.xlu0 %864, %v428
        %v866 = vpop.permute.xlu0 %865
        %868 = vset.pattern.permute.xlu0 2
        %869 = vperm.xlu0 %868, %v429
        %v870 = vpop.permute.xlu0 %869
        %872 = vset.pattern.permute.xlu0 2
        %873 = vperm.xlu0 %872, %v430
        %v874 = vpop.permute.xlu0 %873
        %876 = vset.pattern.permute.xlu0 2
        %877 = vperm.xlu0 %876, %v431
        %v878 = vpop.permute.xlu0 %877
        %880 = vset.pattern.permute.xlu0 2
        %881 = vperm.xlu0 %880, %v432
        %v882 = vpop.permute.xlu0 %881
        %884 = vset.pattern.permute.xlu0 2
        %885 = vperm.xlu0 %884, %v433
        %v886 = vpop.permute.xlu0 %885
        %888 = vset.pattern.permute.xlu0 2
        %889 = vperm.xlu0 %888, %v434
        %v890 = vpop.permute.xlu0 %889
        %892 = vset.pattern.permute.xlu0 2
        %893 = vperm.xlu0 %892, %v435
        %v894 = vpop.permute.xlu0 %893
        %896 = vset.pattern.permute.xlu0 2
        %897 = vperm.xlu0 %896, %v436
        %v898 = vpop.permute.xlu0 %897
        %900 = vset.pattern.permute.xlu0 2
        %901 = vperm.xlu0 %900, %v437
        %v902 = vpop.permute.xlu0 %901
        %v904 = vsel %vm824, %v842, 0.0
        %v905 = vsel %vm825, %v846, 0.0
        %v906 = vsel %vm826, %v850, 0.0
        %v907 = vsel %vm827, %v854, 0.0
        %v908 = vsel %vm828, %v858, 0.0
        %v909 = vsel %vm829, %v862, 0.0
        %v910 = vsel %vm830, %v866, 0.0
        %v911 = vsel %vm831, %v870, 0.0
        %v912 = vsel %vm832, %v874, 0.0
        %v913 = vsel %vm833, %v878, 0.0
        %v914 = vsel %vm834, %v882, 0.0
        %v915 = vsel %vm835, %v886, 0.0
        %v916 = vsel %vm836, %v890, 0.0
        %v917 = vsel %vm837, %v894, 0.0
        %v918 = vsel %vm838, %v898, 0.0
        %v919 = vsel %vm839, %v902, 0.0
        %v920 = vadd.f32 %v760, %v904
        %v921 = vadd.f32 %v761, %v905
        %v922 = vadd.f32 %v762, %v906
        %v923 = vadd.f32 %v763, %v907
        %v924 = vadd.f32 %v764, %v908
        %v925 = vadd.f32 %v765, %v909
        %v926 = vadd.f32 %v766, %v910
        %v927 = vadd.f32 %v767, %v911
        %v928 = vadd.f32 %v768, %v912
        %v929 = vadd.f32 %v769, %v913
        %v930 = vadd.f32 %v770, %v914
        %v931 = vadd.f32 %v771, %v915
        %v932 = vadd.f32 %v772, %v916
        %v933 = vadd.f32 %v773, %v917
        %v934 = vadd.f32 %v774, %v918
        %v935 = vadd.f32 %v775, %v919
        %936 = vset.pattern.permute.xlu0 3
        %937 = vperm.xlu0 %936, %v406
        %v938 = vpop.permute.xlu0 %937
        %939 = vset.pattern.permute.xlu0 3
        %940 = vperm.xlu0 %939, %v407
        %v941 = vpop.permute.xlu0 %940
        %942 = vset.pattern.permute.xlu0 3
        %943 = vperm.xlu0 %942, %v408
        %v944 = vpop.permute.xlu0 %943
        %945 = vset.pattern.permute.xlu0 3
        %946 = vperm.xlu0 %945, %v409
        %v947 = vpop.permute.xlu0 %946
        %948 = vset.pattern.permute.xlu0 3
        %949 = vperm.xlu0 %948, %v410
        %v950 = vpop.permute.xlu0 %949
        %951 = vset.pattern.permute.xlu0 3
        %952 = vperm.xlu0 %951, %v411
        %v953 = vpop.permute.xlu0 %952
        %954 = vset.pattern.permute.xlu0 3
        %955 = vperm.xlu0 %954, %v412
        %v956 = vpop.permute.xlu0 %955
        %957 = vset.pattern.permute.xlu0 3
        %958 = vperm.xlu0 %957, %v413
        %v959 = vpop.permute.xlu0 %958
        %960 = vset.pattern.permute.xlu0 3
        %961 = vperm.xlu0 %960, %v414
        %v962 = vpop.permute.xlu0 %961
        %963 = vset.pattern.permute.xlu0 3
        %964 = vperm.xlu0 %963, %v415
        %v965 = vpop.permute.xlu0 %964
        %966 = vset.pattern.permute.xlu0 3
        %967 = vperm.xlu0 %966, %v416
        %v968 = vpop.permute.xlu0 %967
        %969 = vset.pattern.permute.xlu0 3
        %970 = vperm.xlu0 %969, %v417
        %v971 = vpop.permute.xlu0 %970
        %972 = vset.pattern.permute.xlu0 3
        %973 = vperm.xlu0 %972, %v418
        %v974 = vpop.permute.xlu0 %973
        %975 = vset.pattern.permute.xlu0 3
        %976 = vperm.xlu0 %975, %v419
        %v977 = vpop.permute.xlu0 %976
        %978 = vset.pattern.permute.xlu0 3
        %979 = vperm.xlu0 %978, %v420
        %v980 = vpop.permute.xlu0 %979
        %981 = vset.pattern.permute.xlu0 3
        %982 = vperm.xlu0 %981, %v421
        %v983 = vpop.permute.xlu0 %982
        %vm984 = vcmp.eq.s32.totalorder %v938, %v439
        %vm985 = vcmp.eq.s32.totalorder %v941, %v439
        %vm986 = vcmp.eq.s32.totalorder %v944, %v439
        %vm987 = vcmp.eq.s32.totalorder %v947, %v439
        %vm988 = vcmp.eq.s32.totalorder %v950, %v439
        %vm989 = vcmp.eq.s32.totalorder %v953, %v439
        %vm990 = vcmp.eq.s32.totalorder %v956, %v439
        %vm991 = vcmp.eq.s32.totalorder %v959, %v439
        %vm992 = vcmp.eq.s32.totalorder %v962, %v439
        %vm993 = vcmp.eq.s32.totalorder %v965, %v439
        %vm994 = vcmp.eq.s32.totalorder %v968, %v439
        %vm995 = vcmp.eq.s32.totalorder %v971, %v439
        %vm996 = vcmp.eq.s32.totalorder %v974, %v439
        %vm997 = vcmp.eq.s32.totalorder %v977, %v439
        %vm998 = vcmp.eq.s32.totalorder %v980, %v439
        %vm999 = vcmp.eq.s32.totalorder %v983, %v439
        %1000 = vset.pattern.permute.xlu0 3
        %1001 = vperm.xlu0 %1000, %v422
        %v1002 = vpop.permute.xlu0 %1001
        %1004 = vset.pattern.permute.xlu0 3
        %1005 = vperm.xlu0 %1004, %v423
        %v1006 = vpop.permute.xlu0 %1005
        %1008 = vset.pattern.permute.xlu0 3
        %1009 = vperm.xlu0 %1008, %v424
        %v1010 = vpop.permute.xlu0 %1009
        %1012 = vset.pattern.permute.xlu0 3
        %1013 = vperm.xlu0 %1012, %v425
        %v1014 = vpop.permute.xlu0 %1013
        %1016 = vset.pattern.permute.xlu0 3
        %1017 = vperm.xlu0 %1016, %v426
        %v1018 = vpop.permute.xlu0 %1017
        %1020 = vset.pattern.permute.xlu0 3
        %1021 = vperm.xlu0 %1020, %v427
        %v1022 = vpop.permute.xlu0 %1021
        %1024 = vset.pattern.permute.xlu0 3
        %1025 = vperm.xlu0 %1024, %v428
        %v1026 = vpop.permute.xlu0 %1025
        %1028 = vset.pattern.permute.xlu0 3
        %1029 = vperm.xlu0 %1028, %v429
        %v1030 = vpop.permute.xlu0 %1029
        %1032 = vset.pattern.permute.xlu0 3
        %1033 = vperm.xlu0 %1032, %v430
        %v1034 = vpop.permute.xlu0 %1033
        %1036 = vset.pattern.permute.xlu0 3
        %1037 = vperm.xlu0 %1036, %v431
        %v1038 = vpop.permute.xlu0 %1037
        %1040 = vset.pattern.permute.xlu0 3
        %1041 = vperm.xlu0 %1040, %v432
        %v1042 = vpop.permute.xlu0 %1041
        %1044 = vset.pattern.permute.xlu0 3
        %1045 = vperm.xlu0 %1044, %v433
        %v1046 = vpop.permute.xlu0 %1045
        %1048 = vset.pattern.permute.xlu0 3
        %1049 = vperm.xlu0 %1048, %v434
        %v1050 = vpop.permute.xlu0 %1049
        %1052 = vset.pattern.permute.xlu0 3
        %1053 = vperm.xlu0 %1052, %v435
        %v1054 = vpop.permute.xlu0 %1053
        %1056 = vset.pattern.permute.xlu0 3
        %1057 = vperm.xlu0 %1056, %v436
        %v1058 = vpop.permute.xlu0 %1057
        %1060 = vset.pattern.permute.xlu0 3
        %1061 = vperm.xlu0 %1060, %v437
        %v1062 = vpop.permute.xlu0 %1061
        %v1064 = vsel %vm984, %v1002, 0.0
        %v1065 = vsel %vm985, %v1006, 0.0
        %v1066 = vsel %vm986, %v1010, 0.0
        %v1067 = vsel %vm987, %v1014, 0.0
        %v1068 = vsel %vm988, %v1018, 0.0
        %v1069 = vsel %vm989, %v1022, 0.0
        %v1070 = vsel %vm990, %v1026, 0.0
        %v1071 = vsel %vm991, %v1030, 0.0
        %v1072 = vsel %vm992, %v1034, 0.0
        %v1073 = vsel %vm993, %v1038, 0.0
        %v1074 = vsel %vm994, %v1042, 0.0
        %v1075 = vsel %vm995, %v1046, 0.0
        %v1076 = vsel %vm996, %v1050, 0.0
        %v1077 = vsel %vm997, %v1054, 0.0
        %v1078 = vsel %vm998, %v1058, 0.0
        %v1079 = vsel %vm999, %v1062, 0.0
        %v1080 = vadd.f32 %v920, %v1064
        %v1081 = vadd.f32 %v921, %v1065
        %v1082 = vadd.f32 %v922, %v1066
        %v1083 = vadd.f32 %v923, %v1067
        %v1084 = vadd.f32 %v924, %v1068
        %v1085 = vadd.f32 %v925, %v1069
        %v1086 = vadd.f32 %v926, %v1070
        %v1087 = vadd.f32 %v927, %v1071
        %v1088 = vadd.f32 %v928, %v1072
        %v1089 = vadd.f32 %v929, %v1073
        %v1090 = vadd.f32 %v930, %v1074
        %v1091 = vadd.f32 %v931, %v1075
        %v1092 = vadd.f32 %v932, %v1076
        %v1093 = vadd.f32 %v933, %v1077
        %v1094 = vadd.f32 %v934, %v1078
        %v1095 = vadd.f32 %v935, %v1079
        %1096 = vset.pattern.permute.xlu0 4
        %1097 = vperm.xlu0 %1096, %v406
        %v1098 = vpop.permute.xlu0 %1097
        %1099 = vset.pattern.permute.xlu0 4
        %1100 = vperm.xlu0 %1099, %v407
        %v1101 = vpop.permute.xlu0 %1100
        %1102 = vset.pattern.permute.xlu0 4
        %1103 = vperm.xlu0 %1102, %v408
        %v1104 = vpop.permute.xlu0 %1103
        %1105 = vset.pattern.permute.xlu0 4
        %1106 = vperm.xlu0 %1105, %v409
        %v1107 = vpop.permute.xlu0 %1106
        %1108 = vset.pattern.permute.xlu0 4
        %1109 = vperm.xlu0 %1108, %v410
        %v1110 = vpop.permute.xlu0 %1109
        %1111 = vset.pattern.permute.xlu0 4
        %1112 = vperm.xlu0 %1111, %v411
        %v1113 = vpop.permute.xlu0 %1112
        %1114 = vset.pattern.permute.xlu0 4
        %1115 = vperm.xlu0 %1114, %v412
        %v1116 = vpop.permute.xlu0 %1115
        %1117 = vset.pattern.permute.xlu0 4
        %1118 = vperm.xlu0 %1117, %v413
        %v1119 = vpop.permute.xlu0 %1118
        %1120 = vset.pattern.permute.xlu0 4
        %1121 = vperm.xlu0 %1120, %v414
        %v1122 = vpop.permute.xlu0 %1121
        %1123 = vset.pattern.permute.xlu0 4
        %1124 = vperm.xlu0 %1123, %v415
        %v1125 = vpop.permute.xlu0 %1124
        %1126 = vset.pattern.permute.xlu0 4
        %1127 = vperm.xlu0 %1126, %v416
        %v1128 = vpop.permute.xlu0 %1127
        %1129 = vset.pattern.permute.xlu0 4
        %1130 = vperm.xlu0 %1129, %v417
        %v1131 = vpop.permute.xlu0 %1130
        %1132 = vset.pattern.permute.xlu0 4
        %1133 = vperm.xlu0 %1132, %v418
        %v1134 = vpop.permute.xlu0 %1133
        %1135 = vset.pattern.permute.xlu0 4
        %1136 = vperm.xlu0 %1135, %v419
        %v1137 = vpop.permute.xlu0 %1136
        %1138 = vset.pattern.permute.xlu0 4
        %1139 = vperm.xlu0 %1138, %v420
        %v1140 = vpop.permute.xlu0 %1139
        %1141 = vset.pattern.permute.xlu0 4
        %1142 = vperm.xlu0 %1141, %v421
        %v1143 = vpop.permute.xlu0 %1142
        %vm1144 = vcmp.eq.s32.totalorder %v1098, %v439
        %vm1145 = vcmp.eq.s32.totalorder %v1101, %v439
        %vm1146 = vcmp.eq.s32.totalorder %v1104, %v439
        %vm1147 = vcmp.eq.s32.totalorder %v1107, %v439
        %vm1148 = vcmp.eq.s32.totalorder %v1110, %v439
        %vm1149 = vcmp.eq.s32.totalorder %v1113, %v439
        %vm1150 = vcmp.eq.s32.totalorder %v1116, %v439
        %vm1151 = vcmp.eq.s32.totalorder %v1119, %v439
        %vm1152 = vcmp.eq.s32.totalorder %v1122, %v439
        %vm1153 = vcmp.eq.s32.totalorder %v1125, %v439
        %vm1154 = vcmp.eq.s32.totalorder %v1128, %v439
        %vm1155 = vcmp.eq.s32.totalorder %v1131, %v439
        %vm1156 = vcmp.eq.s32.totalorder %v1134, %v439
        %vm1157 = vcmp.eq.s32.totalorder %v1137, %v439
        %vm1158 = vcmp.eq.s32.totalorder %v1140, %v439
        %vm1159 = vcmp.eq.s32.totalorder %v1143, %v439
        %1160 = vset.pattern.permute.xlu0 4
        %1161 = vperm.xlu0 %1160, %v422
        %v1162 = vpop.permute.xlu0 %1161
        %1164 = vset.pattern.permute.xlu0 4
        %1165 = vperm.xlu0 %1164, %v423
        %v1166 = vpop.permute.xlu0 %1165
        %1168 = vset.pattern.permute.xlu0 4
        %1169 = vperm.xlu0 %1168, %v424
        %v1170 = vpop.permute.xlu0 %1169
        %1172 = vset.pattern.permute.xlu0 4
        %1173 = vperm.xlu0 %1172, %v425
        %v1174 = vpop.permute.xlu0 %1173
        %1176 = vset.pattern.permute.xlu0 4
        %1177 = vperm.xlu0 %1176, %v426
        %v1178 = vpop.permute.xlu0 %1177
        %1180 = vset.pattern.permute.xlu0 4
        %1181 = vperm.xlu0 %1180, %v427
        %v1182 = vpop.permute.xlu0 %1181
        %1184 = vset.pattern.permute.xlu0 4
        %1185 = vperm.xlu0 %1184, %v428
        %v1186 = vpop.permute.xlu0 %1185
        %1188 = vset.pattern.permute.xlu0 4
        %1189 = vperm.xlu0 %1188, %v429
        %v1190 = vpop.permute.xlu0 %1189
        %1192 = vset.pattern.permute.xlu0 4
        %1193 = vperm.xlu0 %1192, %v430
        %v1194 = vpop.permute.xlu0 %1193
        %1196 = vset.pattern.permute.xlu0 4
        %1197 = vperm.xlu0 %1196, %v431
        %v1198 = vpop.permute.xlu0 %1197
        %1200 = vset.pattern.permute.xlu0 4
        %1201 = vperm.xlu0 %1200, %v432
        %v1202 = vpop.permute.xlu0 %1201
        %1204 = vset.pattern.permute.xlu0 4
        %1205 = vperm.xlu0 %1204, %v433
        %v1206 = vpop.permute.xlu0 %1205
        %1208 = vset.pattern.permute.xlu0 4
        %1209 = vperm.xlu0 %1208, %v434
        %v1210 = vpop.permute.xlu0 %1209
        %1212 = vset.pattern.permute.xlu0 4
        %1213 = vperm.xlu0 %1212, %v435
        %v1214 = vpop.permute.xlu0 %1213
        %1216 = vset.pattern.permute.xlu0 4
        %1217 = vperm.xlu0 %1216, %v436
        %v1218 = vpop.permute.xlu0 %1217
        %1220 = vset.pattern.permute.xlu0 4
        %1221 = vperm.xlu0 %1220, %v437
        %v1222 = vpop.permute.xlu0 %1221
        %v1224 = vsel %vm1144, %v1162, 0.0
        %v1225 = vsel %vm1145, %v1166, 0.0
        %v1226 = vsel %vm1146, %v1170, 0.0
        %v1227 = vsel %vm1147, %v1174, 0.0
        %v1228 = vsel %vm1148, %v1178, 0.0
        %v1229 = vsel %vm1149, %v1182, 0.0
        %v1230 = vsel %vm1150, %v1186, 0.0
        %v1231 = vsel %vm1151, %v1190, 0.0
        %v1232 = vsel %vm1152, %v1194, 0.0
        %v1233 = vsel %vm1153, %v1198, 0.0
        %v1234 = vsel %vm1154, %v1202, 0.0
        %v1235 = vsel %vm1155, %v1206, 0.0
        %v1236 = vsel %vm1156, %v1210, 0.0
        %v1237 = vsel %vm1157, %v1214, 0.0
        %v1238 = vsel %vm1158, %v1218, 0.0
        %v1239 = vsel %vm1159, %v1222, 0.0
        %v1240 = vadd.f32 %v1080, %v1224
        %v1241 = vadd.f32 %v1081, %v1225
        %v1242 = vadd.f32 %v1082, %v1226
        %v1243 = vadd.f32 %v1083, %v1227
        %v1244 = vadd.f32 %v1084, %v1228
        %v1245 = vadd.f32 %v1085, %v1229
        %v1246 = vadd.f32 %v1086, %v1230
        %v1247 = vadd.f32 %v1087, %v1231
        %v1248 = vadd.f32 %v1088, %v1232
        %v1249 = vadd.f32 %v1089, %v1233
        %v1250 = vadd.f32 %v1090, %v1234
        %v1251 = vadd.f32 %v1091, %v1235
        %v1252 = vadd.f32 %v1092, %v1236
        %v1253 = vadd.f32 %v1093, %v1237
        %v1254 = vadd.f32 %v1094, %v1238
        %v1255 = vadd.f32 %v1095, %v1239
        %1256 = vset.pattern.permute.xlu0 5
        %1257 = vperm.xlu0 %1256, %v406
        %v1258 = vpop.permute.xlu0 %1257
        %1259 = vset.pattern.permute.xlu0 5
        %1260 = vperm.xlu0 %1259, %v407
        %v1261 = vpop.permute.xlu0 %1260
        %1262 = vset.pattern.permute.xlu0 5
        %1263 = vperm.xlu0 %1262, %v408
        %v1264 = vpop.permute.xlu0 %1263
        %1265 = vset.pattern.permute.xlu0 5
        %1266 = vperm.xlu0 %1265, %v409
        %v1267 = vpop.permute.xlu0 %1266
        %1268 = vset.pattern.permute.xlu0 5
        %1269 = vperm.xlu0 %1268, %v410
        %v1270 = vpop.permute.xlu0 %1269
        %1271 = vset.pattern.permute.xlu0 5
        %1272 = vperm.xlu0 %1271, %v411
        %v1273 = vpop.permute.xlu0 %1272
        %1274 = vset.pattern.permute.xlu0 5
        %1275 = vperm.xlu0 %1274, %v412
        %v1276 = vpop.permute.xlu0 %1275
        %1277 = vset.pattern.permute.xlu0 5
        %1278 = vperm.xlu0 %1277, %v413
        %v1279 = vpop.permute.xlu0 %1278
        %1280 = vset.pattern.permute.xlu0 5
        %1281 = vperm.xlu0 %1280, %v414
        %v1282 = vpop.permute.xlu0 %1281
        %1283 = vset.pattern.permute.xlu0 5
        %1284 = vperm.xlu0 %1283, %v415
        %v1285 = vpop.permute.xlu0 %1284
        %1286 = vset.pattern.permute.xlu0 5
        %1287 = vperm.xlu0 %1286, %v416
        %v1288 = vpop.permute.xlu0 %1287
        %1289 = vset.pattern.permute.xlu0 5
        %1290 = vperm.xlu0 %1289, %v417
        %v1291 = vpop.permute.xlu0 %1290
        %1292 = vset.pattern.permute.xlu0 5
        %1293 = vperm.xlu0 %1292, %v418
        %v1294 = vpop.permute.xlu0 %1293
        %1295 = vset.pattern.permute.xlu0 5
        %1296 = vperm.xlu0 %1295, %v419
        %v1297 = vpop.permute.xlu0 %1296
        %1298 = vset.pattern.permute.xlu0 5
        %1299 = vperm.xlu0 %1298, %v420
        %v1300 = vpop.permute.xlu0 %1299
        %1301 = vset.pattern.permute.xlu0 5
        %1302 = vperm.xlu0 %1301, %v421
        %v1303 = vpop.permute.xlu0 %1302
        %vm1304 = vcmp.eq.s32.totalorder %v1258, %v439
        %vm1305 = vcmp.eq.s32.totalorder %v1261, %v439
        %vm1306 = vcmp.eq.s32.totalorder %v1264, %v439
        %vm1307 = vcmp.eq.s32.totalorder %v1267, %v439
        %vm1308 = vcmp.eq.s32.totalorder %v1270, %v439
        %vm1309 = vcmp.eq.s32.totalorder %v1273, %v439
        %vm1310 = vcmp.eq.s32.totalorder %v1276, %v439
        %vm1311 = vcmp.eq.s32.totalorder %v1279, %v439
        %vm1312 = vcmp.eq.s32.totalorder %v1282, %v439
        %vm1313 = vcmp.eq.s32.totalorder %v1285, %v439
        %vm1314 = vcmp.eq.s32.totalorder %v1288, %v439
        %vm1315 = vcmp.eq.s32.totalorder %v1291, %v439
        %vm1316 = vcmp.eq.s32.totalorder %v1294, %v439
        %vm1317 = vcmp.eq.s32.totalorder %v1297, %v439
        %vm1318 = vcmp.eq.s32.totalorder %v1300, %v439
        %vm1319 = vcmp.eq.s32.totalorder %v1303, %v439
        %1320 = vset.pattern.permute.xlu0 5
        %1321 = vperm.xlu0 %1320, %v422
        %v1322 = vpop.permute.xlu0 %1321
        %1324 = vset.pattern.permute.xlu0 5
        %1325 = vperm.xlu0 %1324, %v423
        %v1326 = vpop.permute.xlu0 %1325
        %1328 = vset.pattern.permute.xlu0 5
        %1329 = vperm.xlu0 %1328, %v424
        %v1330 = vpop.permute.xlu0 %1329
        %1332 = vset.pattern.permute.xlu0 5
        %1333 = vperm.xlu0 %1332, %v425
        %v1334 = vpop.permute.xlu0 %1333
        %1336 = vset.pattern.permute.xlu0 5
        %1337 = vperm.xlu0 %1336, %v426
        %v1338 = vpop.permute.xlu0 %1337
        %1340 = vset.pattern.permute.xlu0 5
        %1341 = vperm.xlu0 %1340, %v427
        %v1342 = vpop.permute.xlu0 %1341
        %1344 = vset.pattern.permute.xlu0 5
        %1345 = vperm.xlu0 %1344, %v428
        %v1346 = vpop.permute.xlu0 %1345
        %1348 = vset.pattern.permute.xlu0 5
        %1349 = vperm.xlu0 %1348, %v429
        %v1350 = vpop.permute.xlu0 %1349
        %1352 = vset.pattern.permute.xlu0 5
        %1353 = vperm.xlu0 %1352, %v430
        %v1354 = vpop.permute.xlu0 %1353
        %1356 = vset.pattern.permute.xlu0 5
        %1357 = vperm.xlu0 %1356, %v431
        %v1358 = vpop.permute.xlu0 %1357
        %1360 = vset.pattern.permute.xlu0 5
        %1361 = vperm.xlu0 %1360, %v432
        %v1362 = vpop.permute.xlu0 %1361
        %1364 = vset.pattern.permute.xlu0 5
        %1365 = vperm.xlu0 %1364, %v433
        %v1366 = vpop.permute.xlu0 %1365
        %1368 = vset.pattern.permute.xlu0 5
        %1369 = vperm.xlu0 %1368, %v434
        %v1370 = vpop.permute.xlu0 %1369
        %1372 = vset.pattern.permute.xlu0 5
        %1373 = vperm.xlu0 %1372, %v435
        %v1374 = vpop.permute.xlu0 %1373
        %1376 = vset.pattern.permute.xlu0 5
        %1377 = vperm.xlu0 %1376, %v436
        %v1378 = vpop.permute.xlu0 %1377
        %1380 = vset.pattern.permute.xlu0 5
        %1381 = vperm.xlu0 %1380, %v437
        %v1382 = vpop.permute.xlu0 %1381
        %v1384 = vsel %vm1304, %v1322, 0.0
        %v1385 = vsel %vm1305, %v1326, 0.0
        %v1386 = vsel %vm1306, %v1330, 0.0
        %v1387 = vsel %vm1307, %v1334, 0.0
        %v1388 = vsel %vm1308, %v1338, 0.0
        %v1389 = vsel %vm1309, %v1342, 0.0
        %v1390 = vsel %vm1310, %v1346, 0.0
        %v1391 = vsel %vm1311, %v1350, 0.0
        %v1392 = vsel %vm1312, %v1354, 0.0
        %v1393 = vsel %vm1313, %v1358, 0.0
        %v1394 = vsel %vm1314, %v1362, 0.0
        %v1395 = vsel %vm1315, %v1366, 0.0
        %v1396 = vsel %vm1316, %v1370, 0.0
        %v1397 = vsel %vm1317, %v1374, 0.0
        %v1398 = vsel %vm1318, %v1378, 0.0
        %v1399 = vsel %vm1319, %v1382, 0.0
        %v1400 = vadd.f32 %v1240, %v1384
        %v1401 = vadd.f32 %v1241, %v1385
        %v1402 = vadd.f32 %v1242, %v1386
        %v1403 = vadd.f32 %v1243, %v1387
        %v1404 = vadd.f32 %v1244, %v1388
        %v1405 = vadd.f32 %v1245, %v1389
        %v1406 = vadd.f32 %v1246, %v1390
        %v1407 = vadd.f32 %v1247, %v1391
        %v1408 = vadd.f32 %v1248, %v1392
        %v1409 = vadd.f32 %v1249, %v1393
        %v1410 = vadd.f32 %v1250, %v1394
        %v1411 = vadd.f32 %v1251, %v1395
        %v1412 = vadd.f32 %v1252, %v1396
        %v1413 = vadd.f32 %v1253, %v1397
        %v1414 = vadd.f32 %v1254, %v1398
        %v1415 = vadd.f32 %v1255, %v1399
        %1416 = vset.pattern.permute.xlu0 6
        %1417 = vperm.xlu0 %1416, %v406
        %v1418 = vpop.permute.xlu0 %1417
        %1419 = vset.pattern.permute.xlu0 6
        %1420 = vperm.xlu0 %1419, %v407
        %v1421 = vpop.permute.xlu0 %1420
        %1422 = vset.pattern.permute.xlu0 6
        %1423 = vperm.xlu0 %1422, %v408
        %v1424 = vpop.permute.xlu0 %1423
        %1425 = vset.pattern.permute.xlu0 6
        %1426 = vperm.xlu0 %1425, %v409
        %v1427 = vpop.permute.xlu0 %1426
        %1428 = vset.pattern.permute.xlu0 6
        %1429 = vperm.xlu0 %1428, %v410
        %v1430 = vpop.permute.xlu0 %1429
        %1431 = vset.pattern.permute.xlu0 6
        %1432 = vperm.xlu0 %1431, %v411
        %v1433 = vpop.permute.xlu0 %1432
        %1434 = vset.pattern.permute.xlu0 6
        %1435 = vperm.xlu0 %1434, %v412
        %v1436 = vpop.permute.xlu0 %1435
        %1437 = vset.pattern.permute.xlu0 6
        %1438 = vperm.xlu0 %1437, %v413
        %v1439 = vpop.permute.xlu0 %1438
        %1440 = vset.pattern.permute.xlu0 6
        %1441 = vperm.xlu0 %1440, %v414
        %v1442 = vpop.permute.xlu0 %1441
        %1443 = vset.pattern.permute.xlu0 6
        %1444 = vperm.xlu0 %1443, %v415
        %v1445 = vpop.permute.xlu0 %1444
        %1446 = vset.pattern.permute.xlu0 6
        %1447 = vperm.xlu0 %1446, %v416
        %v1448 = vpop.permute.xlu0 %1447
        %1449 = vset.pattern.permute.xlu0 6
        %1450 = vperm.xlu0 %1449, %v417
        %v1451 = vpop.permute.xlu0 %1450
        %1452 = vset.pattern.permute.xlu0 6
        %1453 = vperm.xlu0 %1452, %v418
        %v1454 = vpop.permute.xlu0 %1453
        %1455 = vset.pattern.permute.xlu0 6
        %1456 = vperm.xlu0 %1455, %v419
        %v1457 = vpop.permute.xlu0 %1456
        %1458 = vset.pattern.permute.xlu0 6
        %1459 = vperm.xlu0 %1458, %v420
        %v1460 = vpop.permute.xlu0 %1459
        %1461 = vset.pattern.permute.xlu0 6
        %1462 = vperm.xlu0 %1461, %v421
        %v1463 = vpop.permute.xlu0 %1462
        %vm1464 = vcmp.eq.s32.totalorder %v1418, %v439
        %vm1465 = vcmp.eq.s32.totalorder %v1421, %v439
        %vm1466 = vcmp.eq.s32.totalorder %v1424, %v439
        %vm1467 = vcmp.eq.s32.totalorder %v1427, %v439
        %vm1468 = vcmp.eq.s32.totalorder %v1430, %v439
        %vm1469 = vcmp.eq.s32.totalorder %v1433, %v439
        %vm1470 = vcmp.eq.s32.totalorder %v1436, %v439
        %vm1471 = vcmp.eq.s32.totalorder %v1439, %v439
        %vm1472 = vcmp.eq.s32.totalorder %v1442, %v439
        %vm1473 = vcmp.eq.s32.totalorder %v1445, %v439
        %vm1474 = vcmp.eq.s32.totalorder %v1448, %v439
        %vm1475 = vcmp.eq.s32.totalorder %v1451, %v439
        %vm1476 = vcmp.eq.s32.totalorder %v1454, %v439
        %vm1477 = vcmp.eq.s32.totalorder %v1457, %v439
        %vm1478 = vcmp.eq.s32.totalorder %v1460, %v439
        %vm1479 = vcmp.eq.s32.totalorder %v1463, %v439
        %1480 = vset.pattern.permute.xlu0 6
        %1481 = vperm.xlu0 %1480, %v422
        %v1482 = vpop.permute.xlu0 %1481
        %1484 = vset.pattern.permute.xlu0 6
        %1485 = vperm.xlu0 %1484, %v423
        %v1486 = vpop.permute.xlu0 %1485
        %1488 = vset.pattern.permute.xlu0 6
        %1489 = vperm.xlu0 %1488, %v424
        %v1490 = vpop.permute.xlu0 %1489
        %1492 = vset.pattern.permute.xlu0 6
        %1493 = vperm.xlu0 %1492, %v425
        %v1494 = vpop.permute.xlu0 %1493
        %1496 = vset.pattern.permute.xlu0 6
        %1497 = vperm.xlu0 %1496, %v426
        %v1498 = vpop.permute.xlu0 %1497
        %1500 = vset.pattern.permute.xlu0 6
        %1501 = vperm.xlu0 %1500, %v427
        %v1502 = vpop.permute.xlu0 %1501
        %1504 = vset.pattern.permute.xlu0 6
        %1505 = vperm.xlu0 %1504, %v428
        %v1506 = vpop.permute.xlu0 %1505
        %1508 = vset.pattern.permute.xlu0 6
        %1509 = vperm.xlu0 %1508, %v429
        %v1510 = vpop.permute.xlu0 %1509
        %1512 = vset.pattern.permute.xlu0 6
        %1513 = vperm.xlu0 %1512, %v430
        %v1514 = vpop.permute.xlu0 %1513
        %1516 = vset.pattern.permute.xlu0 6
        %1517 = vperm.xlu0 %1516, %v431
        %v1518 = vpop.permute.xlu0 %1517
        %1520 = vset.pattern.permute.xlu0 6
        %1521 = vperm.xlu0 %1520, %v432
        %v1522 = vpop.permute.xlu0 %1521
        %1524 = vset.pattern.permute.xlu0 6
        %1525 = vperm.xlu0 %1524, %v433
        %v1526 = vpop.permute.xlu0 %1525
        %1528 = vset.pattern.permute.xlu0 6
        %1529 = vperm.xlu0 %1528, %v434
        %v1530 = vpop.permute.xlu0 %1529
        %1532 = vset.pattern.permute.xlu0 6
        %1533 = vperm.xlu0 %1532, %v435
        %v1534 = vpop.permute.xlu0 %1533
        %1536 = vset.pattern.permute.xlu0 6
        %1537 = vperm.xlu0 %1536, %v436
        %v1538 = vpop.permute.xlu0 %1537
        %1540 = vset.pattern.permute.xlu0 6
        %1541 = vperm.xlu0 %1540, %v437
        %v1542 = vpop.permute.xlu0 %1541
        %v1544 = vsel %vm1464, %v1482, 0.0
        %v1545 = vsel %vm1465, %v1486, 0.0
        %v1546 = vsel %vm1466, %v1490, 0.0
        %v1547 = vsel %vm1467, %v1494, 0.0
        %v1548 = vsel %vm1468, %v1498, 0.0
        %v1549 = vsel %vm1469, %v1502, 0.0
        %v1550 = vsel %vm1470, %v1506, 0.0
        %v1551 = vsel %vm1471, %v1510, 0.0
        %v1552 = vsel %vm1472, %v1514, 0.0
        %v1553 = vsel %vm1473, %v1518, 0.0
        %v1554 = vsel %vm1474, %v1522, 0.0
        %v1555 = vsel %vm1475, %v1526, 0.0
        %v1556 = vsel %vm1476, %v1530, 0.0
        %v1557 = vsel %vm1477, %v1534, 0.0
        %v1558 = vsel %vm1478, %v1538, 0.0
        %v1559 = vsel %vm1479, %v1542, 0.0
        %v1560 = vadd.f32 %v1400, %v1544
        %v1561 = vadd.f32 %v1401, %v1545
        %v1562 = vadd.f32 %v1402, %v1546
        %v1563 = vadd.f32 %v1403, %v1547
        %v1564 = vadd.f32 %v1404, %v1548
        %v1565 = vadd.f32 %v1405, %v1549
        %v1566 = vadd.f32 %v1406, %v1550
        %v1567 = vadd.f32 %v1407, %v1551
        %v1568 = vadd.f32 %v1408, %v1552
        %v1569 = vadd.f32 %v1409, %v1553
        %v1570 = vadd.f32 %v1410, %v1554
        %v1571 = vadd.f32 %v1411, %v1555
        %v1572 = vadd.f32 %v1412, %v1556
        %v1573 = vadd.f32 %v1413, %v1557
        %v1574 = vadd.f32 %v1414, %v1558
        %v1575 = vadd.f32 %v1415, %v1559
        %1576 = vset.pattern.permute.xlu0 7
        %1577 = vperm.xlu0 %1576, %v406
        %v1578 = vpop.permute.xlu0 %1577
        %1579 = vset.pattern.permute.xlu0 7
        %1580 = vperm.xlu0 %1579, %v407
        %v1581 = vpop.permute.xlu0 %1580
        %1582 = vset.pattern.permute.xlu0 7
        %1583 = vperm.xlu0 %1582, %v408
        %v1584 = vpop.permute.xlu0 %1583
        %1585 = vset.pattern.permute.xlu0 7
        %1586 = vperm.xlu0 %1585, %v409
        %v1587 = vpop.permute.xlu0 %1586
        %1588 = vset.pattern.permute.xlu0 7
        %1589 = vperm.xlu0 %1588, %v410
        %v1590 = vpop.permute.xlu0 %1589
        %1591 = vset.pattern.permute.xlu0 7
        %1592 = vperm.xlu0 %1591, %v411
        %v1593 = vpop.permute.xlu0 %1592
        %1594 = vset.pattern.permute.xlu0 7
        %1595 = vperm.xlu0 %1594, %v412
        %v1596 = vpop.permute.xlu0 %1595
        %1597 = vset.pattern.permute.xlu0 7
        %1598 = vperm.xlu0 %1597, %v413
        %v1599 = vpop.permute.xlu0 %1598
        %1600 = vset.pattern.permute.xlu0 7
        %1601 = vperm.xlu0 %1600, %v414
        %v1602 = vpop.permute.xlu0 %1601
        %1603 = vset.pattern.permute.xlu0 7
        %1604 = vperm.xlu0 %1603, %v415
        %v1605 = vpop.permute.xlu0 %1604
        %1606 = vset.pattern.permute.xlu0 7
        %1607 = vperm.xlu0 %1606, %v416
        %v1608 = vpop.permute.xlu0 %1607
        %1609 = vset.pattern.permute.xlu0 7
        %1610 = vperm.xlu0 %1609, %v417
        %v1611 = vpop.permute.xlu0 %1610
        %1612 = vset.pattern.permute.xlu0 7
        %1613 = vperm.xlu0 %1612, %v418
        %v1614 = vpop.permute.xlu0 %1613
        %1615 = vset.pattern.permute.xlu0 7
        %1616 = vperm.xlu0 %1615, %v419
        %v1617 = vpop.permute.xlu0 %1616
        %1618 = vset.pattern.permute.xlu0 7
        %1619 = vperm.xlu0 %1618, %v420
        %v1620 = vpop.permute.xlu0 %1619
        %1621 = vset.pattern.permute.xlu0 7
        %1622 = vperm.xlu0 %1621, %v421
        %v1623 = vpop.permute.xlu0 %1622
        %vm1624 = vcmp.eq.s32.totalorder %v1578, %v439
        %vm1625 = vcmp.eq.s32.totalorder %v1581, %v439
        %vm1626 = vcmp.eq.s32.totalorder %v1584, %v439
        %vm1627 = vcmp.eq.s32.totalorder %v1587, %v439
        %vm1628 = vcmp.eq.s32.totalorder %v1590, %v439
        %vm1629 = vcmp.eq.s32.totalorder %v1593, %v439
        %vm1630 = vcmp.eq.s32.totalorder %v1596, %v439
        %vm1631 = vcmp.eq.s32.totalorder %v1599, %v439
        %vm1632 = vcmp.eq.s32.totalorder %v1602, %v439
        %vm1633 = vcmp.eq.s32.totalorder %v1605, %v439
        %vm1634 = vcmp.eq.s32.totalorder %v1608, %v439
        %vm1635 = vcmp.eq.s32.totalorder %v1611, %v439
        %vm1636 = vcmp.eq.s32.totalorder %v1614, %v439
        %vm1637 = vcmp.eq.s32.totalorder %v1617, %v439
        %vm1638 = vcmp.eq.s32.totalorder %v1620, %v439
        %vm1639 = vcmp.eq.s32.totalorder %v1623, %v439
        %1640 = vset.pattern.permute.xlu0 7
        %1641 = vperm.xlu0 %1640, %v422
        %v1642 = vpop.permute.xlu0 %1641
        %1644 = vset.pattern.permute.xlu0 7
        %1645 = vperm.xlu0 %1644, %v423
        %v1646 = vpop.permute.xlu0 %1645
        %1648 = vset.pattern.permute.xlu0 7
        %1649 = vperm.xlu0 %1648, %v424
        %v1650 = vpop.permute.xlu0 %1649
        %1652 = vset.pattern.permute.xlu0 7
        %1653 = vperm.xlu0 %1652, %v425
        %v1654 = vpop.permute.xlu0 %1653
        %1656 = vset.pattern.permute.xlu0 7
        %1657 = vperm.xlu0 %1656, %v426
        %v1658 = vpop.permute.xlu0 %1657
        %1660 = vset.pattern.permute.xlu0 7
        %1661 = vperm.xlu0 %1660, %v427
        %v1662 = vpop.permute.xlu0 %1661
        %1664 = vset.pattern.permute.xlu0 7
        %1665 = vperm.xlu0 %1664, %v428
        %v1666 = vpop.permute.xlu0 %1665
        %1668 = vset.pattern.permute.xlu0 7
        %1669 = vperm.xlu0 %1668, %v429
        %v1670 = vpop.permute.xlu0 %1669
        %1672 = vset.pattern.permute.xlu0 7
        %1673 = vperm.xlu0 %1672, %v430
        %v1674 = vpop.permute.xlu0 %1673
        %1676 = vset.pattern.permute.xlu0 7
        %1677 = vperm.xlu0 %1676, %v431
        %v1678 = vpop.permute.xlu0 %1677
        %1680 = vset.pattern.permute.xlu0 7
        %1681 = vperm.xlu0 %1680, %v432
        %v1682 = vpop.permute.xlu0 %1681
        %1684 = vset.pattern.permute.xlu0 7
        %1685 = vperm.xlu0 %1684, %v433
        %v1686 = vpop.permute.xlu0 %1685
        %1688 = vset.pattern.permute.xlu0 7
        %1689 = vperm.xlu0 %1688, %v434
        %v1690 = vpop.permute.xlu0 %1689
        %1692 = vset.pattern.permute.xlu0 7
        %1693 = vperm.xlu0 %1692, %v435
        %v1694 = vpop.permute.xlu0 %1693
        %1696 = vset.pattern.permute.xlu0 7
        %1697 = vperm.xlu0 %1696, %v436
        %v1698 = vpop.permute.xlu0 %1697
        %1700 = vset.pattern.permute.xlu0 7
        %1701 = vperm.xlu0 %1700, %v437
        %v1702 = vpop.permute.xlu0 %1701
        %v1704 = vsel %vm1624, %v1642, 0.0
        %v1705 = vsel %vm1625, %v1646, 0.0
        %v1706 = vsel %vm1626, %v1650, 0.0
        %v1707 = vsel %vm1627, %v1654, 0.0
        %v1708 = vsel %vm1628, %v1658, 0.0
        %v1709 = vsel %vm1629, %v1662, 0.0
        %v1710 = vsel %vm1630, %v1666, 0.0
        %v1711 = vsel %vm1631, %v1670, 0.0
        %v1712 = vsel %vm1632, %v1674, 0.0
        %v1713 = vsel %vm1633, %v1678, 0.0
        %v1714 = vsel %vm1634, %v1682, 0.0
        %v1715 = vsel %vm1635, %v1686, 0.0
        %v1716 = vsel %vm1636, %v1690, 0.0
        %v1717 = vsel %vm1637, %v1694, 0.0
        %v1718 = vsel %vm1638, %v1698, 0.0
        %v1719 = vsel %vm1639, %v1702, 0.0
        %v1720 = vadd.f32 %v1560, %v1704
        %v1721 = vadd.f32 %v1561, %v1705
        %v1722 = vadd.f32 %v1562, %v1706
        %v1723 = vadd.f32 %v1563, %v1707
        %v1724 = vadd.f32 %v1564, %v1708
        %v1725 = vadd.f32 %v1565, %v1709
        %v1726 = vadd.f32 %v1566, %v1710
        %v1727 = vadd.f32 %v1567, %v1711
        %v1728 = vadd.f32 %v1568, %v1712
        %v1729 = vadd.f32 %v1569, %v1713
        %v1730 = vadd.f32 %v1570, %v1714
        %v1731 = vadd.f32 %v1571, %v1715
        %v1732 = vadd.f32 %v1572, %v1716
        %v1733 = vadd.f32 %v1573, %v1717
        %v1734 = vadd.f32 %v1574, %v1718
        %v1735 = vadd.f32 %v1575, %v1719
        %vm1736 = vcmask 64512
        %v1737 = vsel %vm1736, %v422, 0.0
        %1738 = vadd.xlane.f32.xlu0 %v1737
        %v1739 = vpop.xlane.xlu0 %1738
        %v1740 = vsel %vm1736, %v423, 0.0
        %1741 = vadd.xlane.f32.xlu0 %v1740
        %v1742 = vpop.xlane.xlu0 %1741
        %v1743 = vsel %vm1736, %v424, 0.0
        %1744 = vadd.xlane.f32.xlu0 %v1743
        %v1745 = vpop.xlane.xlu0 %1744
        %v1746 = vsel %vm1736, %v425, 0.0
        %1747 = vadd.xlane.f32.xlu0 %v1746
        %v1748 = vpop.xlane.xlu0 %1747
        %v1749 = vsel %vm1736, %v426, 0.0
        %1750 = vadd.xlane.f32.xlu0 %v1749
        %v1751 = vpop.xlane.xlu0 %1750
        %v1752 = vsel %vm1736, %v427, 0.0
        %1753 = vadd.xlane.f32.xlu0 %v1752
        %v1754 = vpop.xlane.xlu0 %1753
        %v1755 = vsel %vm1736, %v428, 0.0
        %1756 = vadd.xlane.f32.xlu0 %v1755
        %v1757 = vpop.xlane.xlu0 %1756
        %v1758 = vsel %vm1736, %v429, 0.0
        %1759 = vadd.xlane.f32.xlu0 %v1758
        %v1760 = vpop.xlane.xlu0 %1759
        %v1761 = vsel %vm1736, %v430, 0.0
        %1762 = vadd.xlane.f32.xlu0 %v1761
        %v1763 = vpop.xlane.xlu0 %1762
        %v1764 = vsel %vm1736, %v431, 0.0
        %1765 = vadd.xlane.f32.xlu0 %v1764
        %v1766 = vpop.xlane.xlu0 %1765
        %v1767 = vsel %vm1736, %v432, 0.0
        %1768 = vadd.xlane.f32.xlu0 %v1767
        %v1769 = vpop.xlane.xlu0 %1768
        %v1770 = vsel %vm1736, %v433, 0.0
        %1771 = vadd.xlane.f32.xlu0 %v1770
        %v1772 = vpop.xlane.xlu0 %1771
        %v1773 = vsel %vm1736, %v434, 0.0
        %1774 = vadd.xlane.f32.xlu0 %v1773
        %v1775 = vpop.xlane.xlu0 %1774
        %v1776 = vsel %vm1736, %v435, 0.0
        %1777 = vadd.xlane.f32.xlu0 %v1776
        %v1778 = vpop.xlane.xlu0 %1777
        %v1779 = vsel %vm1736, %v436, 0.0
        %1780 = vadd.xlane.f32.xlu0 %v1779
        %v1781 = vpop.xlane.xlu0 %1780
        %v1782 = vsel %vm1736, %v437, 0.0
        %1783 = vadd.xlane.f32.xlu0 %v1782
        %v1784 = vpop.xlane.xlu0 %1783
        %v1785 = vmax.f32 %v1739, 1.0
        %v1786 = vmax.f32 %v1742, 1.0
        %v1787 = vmax.f32 %v1745, 1.0
        %v1788 = vmax.f32 %v1748, 1.0
        %v1789 = vmax.f32 %v1751, 1.0
        %v1790 = vmax.f32 %v1754, 1.0
        %v1791 = vmax.f32 %v1757, 1.0
        %v1792 = vmax.f32 %v1760, 1.0
        %v1793 = vmax.f32 %v1763, 1.0
        %v1794 = vmax.f32 %v1766, 1.0
        %v1795 = vmax.f32 %v1769, 1.0
        %v1796 = vmax.f32 %v1772, 1.0
        %v1797 = vmax.f32 %v1775, 1.0
        %v1798 = vmax.f32 %v1778, 1.0
        %v1799 = vmax.f32 %v1781, 1.0
        %v1800 = vmax.f32 %v1784, 1.0
        %v1801 = vpack.c.bf16 %v1721, %v1720
        %v1802 = vpack.c.bf16 %v1723, %v1722
        %v1803 = vpack.c.bf16 %v1725, %v1724
        %v1804 = vpack.c.bf16 %v1727, %v1726
        %v1805 = vpack.c.bf16 %v1729, %v1728
        %v1806 = vpack.c.bf16 %v1731, %v1730
        %v1807 = vpack.c.bf16 %v1733, %v1732
        %v1808 = vpack.c.bf16 %v1735, %v1734
        %v1809 = vld [vmem:[%s3] sm:$0xff]
        %v1810 = vld [vmem:[%s3 + $0x8] sm:$0xff]
        %v1811 = vld [vmem:[%s3 + $0x10] sm:$0xff]
        %v1812 = vld [vmem:[%s3 + $0x18] sm:$0xff]
        %v1813 = vld [vmem:[%s3 + $0x20] sm:$0xff]
        %v1814 = vld [vmem:[%s3 + $0x28] sm:$0xff]
        %v1815 = vld [vmem:[%s3 + $0x30] sm:$0xff]
        %v1816 = vld [vmem:[%s3 + $0x38] sm:$0xff]
        %v1817 = vpack.c.bf16 %v1810, %v1809
        %v1818 = vpack.c.bf16 %v1812, %v1811
        %v1819 = vpack.c.bf16 %v1814, %v1813
        %v1820 = vpack.c.bf16 %v1816, %v1815
        %vm1821 = vcmask 523264
        %v1823 = vsel %vm1821, %v1801, 0
        %v1826 = vsel %vm1821, %v1802, 0
        %v1829 = vsel %vm1821, %v1803, 0
        %v1832 = vsel %vm1821, %v1804, 0
        %v1835 = vsel %vm1821, %v1805, 0
        %v1838 = vsel %vm1821, %v1806, 0
        %v1841 = vsel %vm1821, %v1807, 0
        %v1844 = vsel %vm1821, %v1808, 0
        %1846 = vmatpush.bf16.msra.mxu0 0
        %1847 = vmatpush.bf16.msra.mxu0 0
        %1848 = vmatpush.bf16.msra.mxu0 0
        %1849 = vmatpush.bf16.msra.mxu0 0
        %1850 = vmatpush.bf16.msra.mxu0 %v1820
        %1851 = vmatpush.bf16.msra.mxu0 %v1819
        %1852 = vmatpush.bf16.msra.mxu0 %v1818
        %1853 = vmatpush.bf16.msra.mxu0 %v1817
        %1854 = vmatmul.bf16.gmra.mxu0 %v1823
        %v1855 = vpop.f32.mrf.mxu0
        %v1856 = vadd.f32 0.0, %v1855
        %v1857 = vpop.f32.mrf.mxu0
        %v1858 = vadd.f32 0.0, %v1857
        %1859 = vmatmul.bf16.gmra.mxu0 %v1826
        %v1860 = vpop.f32.mrf.mxu0
        %v1861 = vadd.f32 0.0, %v1860
        %v1862 = vpop.f32.mrf.mxu0
        %v1863 = vadd.f32 0.0, %v1862
        %1864 = vmatmul.bf16.gmra.mxu0 %v1829
        %v1865 = vpop.f32.mrf.mxu0
        %v1866 = vadd.f32 0.0, %v1865
        %v1867 = vpop.f32.mrf.mxu0
        %v1868 = vadd.f32 0.0, %v1867
        %1869 = vmatmul.bf16.gmra.mxu0 %v1832
        %v1870 = vpop.f32.mrf.mxu0
        %v1871 = vadd.f32 0.0, %v1870
        %v1872 = vpop.f32.mrf.mxu0
        %v1873 = vadd.f32 0.0, %v1872
        %1874 = vmatmul.bf16.gmra.mxu0 %v1835
        %v1875 = vpop.f32.mrf.mxu0
        %v1876 = vadd.f32 0.0, %v1875
        %v1877 = vpop.f32.mrf.mxu0
        %v1878 = vadd.f32 0.0, %v1877
        %1879 = vmatmul.bf16.gmra.mxu0 %v1838
        %v1880 = vpop.f32.mrf.mxu0
        %v1881 = vadd.f32 0.0, %v1880
        %v1882 = vpop.f32.mrf.mxu0
        %v1883 = vadd.f32 0.0, %v1882
        %1884 = vmatmul.bf16.gmra.mxu0 %v1841
        %v1885 = vpop.f32.mrf.mxu0
        %v1886 = vadd.f32 0.0, %v1885
        %v1887 = vpop.f32.mrf.mxu0
        %v1888 = vadd.f32 0.0, %v1887
        %1889 = vmatmul.bf16.gmra.mxu0 %v1844
        %v1890 = vpop.f32.mrf.mxu0
        %v1891 = vadd.f32 0.0, %v1890
        %v1892 = vpop.f32.mrf.mxu0
        %v1893 = vadd.f32 0.0, %v1892
        %1894 = vdwg.mxu0
        %v1895 = vrcp.pop %v1785
        %v1896 = vrcp.pop %v1786
        %v1897 = vrcp.pop %v1787
        %v1898 = vrcp.pop %v1788
        %v1899 = vrcp.pop %v1789
        %v1900 = vrcp.pop %v1790
        %v1901 = vrcp.pop %v1791
        %v1902 = vrcp.pop %v1792
        %v1903 = vrcp.pop %v1793
        %v1904 = vrcp.pop %v1794
        %v1905 = vrcp.pop %v1795
        %v1906 = vrcp.pop %v1796
        %v1907 = vrcp.pop %v1797
        %v1908 = vrcp.pop %v1798
        %v1909 = vrcp.pop %v1799
        %v1910 = vrcp.pop %v1800
        %v1911 = vmul.f32 %v1856, %v1895
        %v1912 = vmul.f32 %v1858, %v1896
        %v1913 = vmul.f32 %v1861, %v1897
        %v1914 = vmul.f32 %v1863, %v1898
        %v1915 = vmul.f32 %v1866, %v1899
        %v1916 = vmul.f32 %v1868, %v1900
        %v1917 = vmul.f32 %v1871, %v1901
        %v1918 = vmul.f32 %v1873, %v1902
        %v1919 = vmul.f32 %v1876, %v1903
        %v1920 = vmul.f32 %v1878, %v1904
        %v1921 = vmul.f32 %v1881, %v1905
        %v1922 = vmul.f32 %v1883, %v1906
        %v1923 = vmul.f32 %v1886, %v1907
        %v1924 = vmul.f32 %v1888, %v1908
        %v1925 = vmul.f32 %v1891, %v1909
        %v1926 = vmul.f32 %v1893, %v1910
        %v1927 = vpack.c.bf16 %v1912, %v1911
        %v1928 = vpack.c.bf16 %v1914, %v1913
        %v1929 = vpack.c.bf16 %v1916, %v1915
        %v1930 = vpack.c.bf16 %v1918, %v1917
        %v1931 = vpack.c.bf16 %v1920, %v1919
        %v1932 = vpack.c.bf16 %v1922, %v1921
        %v1933 = vpack.c.bf16 %v1924, %v1923
        %v1934 = vpack.c.bf16 %v1926, %v1925
        %v1935 = vld [vmem:[%s4] sm:$0xff]
        %v1936 = vld [vmem:[%s4 + $0x8] sm:$0xff]
        %v1937 = vld [vmem:[%s4 + $0x10] sm:$0xff]
        %v1938 = vld [vmem:[%s4 + $0x18] sm:$0xff]
        %v1939 = vpack.c.bf16 %v1936, %v1935
        %v1940 = vpack.c.bf16 %v1938, %v1937
        %v1941 = vld [vmem:[%s5] sm:$0x1]
        %v1943 = vperm.slane %v1941, 0
        %vm1945 = vcmask 261120
        %v1947 = vsel %vm1945, %v1927, 0
        %v1950 = vsel %vm1945, %v1928, 0
        %v1953 = vsel %vm1945, %v1929, 0
        %v1956 = vsel %vm1945, %v1930, 0
        %v1959 = vsel %vm1945, %v1931, 0
        %v1962 = vsel %vm1945, %v1932, 0
        %v1965 = vsel %vm1945, %v1933, 0
        %v1968 = vsel %vm1945, %v1934, 0
        %1970 = vmatpush.bf16.msra.mxu0 0
        %1971 = vmatpush.bf16.msra.mxu0 0
        %1972 = vmatpush.bf16.msra.mxu0 0
        %1973 = vmatpush.bf16.msra.mxu0 0
        %1974 = vmatpush.bf16.msra.mxu0 0
        %1975 = vmatpush.bf16.msra.mxu0 0
        %1976 = vmatpush.bf16.msra.mxu0 %v1940
        %1977 = vmatpush.bf16.msra.mxu0 %v1939
        %1978 = vmatmul.bf16.gmra.mxu0 %v1947
        %v1979 = vpop.f32.mrf.mxu0
        %v1980 = vadd.f32 %v1943, %v1979
        %v1981 = vpop.f32.mrf.mxu0
        %v1982 = vadd.f32 %v1943, %v1981
        %1983 = vmatmul.bf16.gmra.mxu0 %v1950
        %v1984 = vpop.f32.mrf.mxu0
        %v1985 = vadd.f32 %v1943, %v1984
        %v1986 = vpop.f32.mrf.mxu0
        %v1987 = vadd.f32 %v1943, %v1986
        %1988 = vmatmul.bf16.gmra.mxu0 %v1953
        %v1989 = vpop.f32.mrf.mxu0
        %v1990 = vadd.f32 %v1943, %v1989
        %v1991 = vpop.f32.mrf.mxu0
        %v1992 = vadd.f32 %v1943, %v1991
        %1993 = vmatmul.bf16.gmra.mxu0 %v1956
        %v1994 = vpop.f32.mrf.mxu0
        %v1995 = vadd.f32 %v1943, %v1994
        %v1996 = vpop.f32.mrf.mxu0
        %v1997 = vadd.f32 %v1943, %v1996
        %1998 = vmatmul.bf16.gmra.mxu0 %v1959
        %v1999 = vpop.f32.mrf.mxu0
        %v2000 = vadd.f32 %v1943, %v1999
        %v2001 = vpop.f32.mrf.mxu0
        %v2002 = vadd.f32 %v1943, %v2001
        %2003 = vmatmul.bf16.gmra.mxu0 %v1962
        %v2004 = vpop.f32.mrf.mxu0
        %v2005 = vadd.f32 %v1943, %v2004
        %v2006 = vpop.f32.mrf.mxu0
        %v2007 = vadd.f32 %v1943, %v2006
        %2008 = vmatmul.bf16.gmra.mxu0 %v1965
        %v2009 = vpop.f32.mrf.mxu0
        %v2010 = vadd.f32 %v1943, %v2009
        %v2011 = vpop.f32.mrf.mxu0
        %v2012 = vadd.f32 %v1943, %v2011
        %2013 = vmatmul.bf16.gmra.mxu0 %v1968
        %v2014 = vpop.f32.mrf.mxu0
        %v2015 = vadd.f32 %v1943, %v2014
        %v2016 = vpop.f32.mrf.mxu0
        %v2017 = vadd.f32 %v1943, %v2016
        %2018 = vdwg.mxu0
        %v2019 = vtanh.pop %v1980
        %v2020 = vtanh.pop %v1982
        %v2021 = vtanh.pop %v1985
        %v2022 = vtanh.pop %v1987
        %v2023 = vtanh.pop %v1990
        %v2024 = vtanh.pop %v1992
        %v2025 = vtanh.pop %v1995
        %v2026 = vtanh.pop %v1997
        %v2027 = vtanh.pop %v2000
        %v2028 = vtanh.pop %v2002
        %v2029 = vtanh.pop %v2005
        %v2030 = vtanh.pop %v2007
        %v2031 = vtanh.pop %v2010
        %v2032 = vtanh.pop %v2012
        %v2033 = vtanh.pop %v2015
        %v2034 = vtanh.pop %v2017
        %v2035 = vld [vmem:[%s402] sm:$0xff]
        %v2036 = vld [vmem:[%s402 + $0x8] sm:$0xff]
        %v2037 = vld [vmem:[%s402 + $0x10] sm:$0xff]
        %v2038 = vld [vmem:[%s402 + $0x18] sm:$0xff]
        %v2039 = vld [vmem:[%s402 + $0x20] sm:$0xff]
        %v2040 = vld [vmem:[%s402 + $0x28] sm:$0xff]
        %v2041 = vld [vmem:[%s402 + $0x30] sm:$0xff]
        %v2042 = vld [vmem:[%s402 + $0x38] sm:$0xff]
        %v2043 = vld [vmem:[%s402 + $0x40] sm:$0xff]
        %v2044 = vld [vmem:[%s402 + $0x48] sm:$0xff]
        %v2045 = vld [vmem:[%s402 + $0x50] sm:$0xff]
        %v2046 = vld [vmem:[%s402 + $0x58] sm:$0xff]
        %v2047 = vld [vmem:[%s402 + $0x60] sm:$0xff]
        %v2048 = vld [vmem:[%s402 + $0x68] sm:$0xff]
        %v2049 = vld [vmem:[%s402 + $0x70] sm:$0xff]
        %v2050 = vld [vmem:[%s402 + $0x78] sm:$0xff]
        %v2051 = vpack.c.bf16 %v2036, %v2035
        %v2052 = vpack.c.bf16 %v2038, %v2037
        %v2053 = vpack.c.bf16 %v2040, %v2039
        %v2054 = vpack.c.bf16 %v2042, %v2041
        %v2055 = vpack.c.bf16 %v2044, %v2043
        %v2056 = vpack.c.bf16 %v2046, %v2045
        %v2057 = vpack.c.bf16 %v2048, %v2047
        %v2058 = vpack.c.bf16 %v2050, %v2049
        %v2059 = vld [vmem:[%s6] sm:$0x1f]
        %v2060 = vpack.c.bf16 %v2059, %v2059
        %v2061 = vld [vmem:[%s7] sm:$0x1]
        %v2063 = vperm.slane %v2061, 0
        %vm2065 = vcmask 39936
        %v2067 = vsel %vm2065, %v2051, 0
        %v2070 = vsel %vm2065, %v2052, 0
        %v2073 = vsel %vm2065, %v2053, 0
        %v2076 = vsel %vm2065, %v2054, 0
        %v2079 = vsel %vm2065, %v2055, 0
        %v2082 = vsel %vm2065, %v2056, 0
        %v2085 = vsel %vm2065, %v2057, 0
        %v2088 = vsel %vm2065, %v2058, 0
        %vm2090 = vcmask 1041408
        %vm2091 = vcmask 1042432
        %v2092 = vsel %vm2090, 4294967295, 65535
        %v2093 = vsel %vm2091, %v2092, 0
        %v2095 = vand.u32 %v2060, %v2093
        %2097 = vmatpush.bf16.msra.mxu0 0
        %2098 = vmatpush.bf16.msra.mxu0 0
        %2099 = vmatpush.bf16.msra.mxu0 0
        %2100 = vmatpush.bf16.msra.mxu0 0
        %2101 = vmatpush.bf16.msra.mxu0 0
        %2102 = vmatpush.bf16.msra.mxu0 0
        %2103 = vmatpush.bf16.msra.mxu0 0
        %2104 = vmatpush.bf16.msra.mxu0 %v2095
        %2105 = vmatmul.bf16.gmra.mxu0 %v2067
        %v2106 = vpop.f32.mrf.mxu0
        %v2107 = vadd.f32 %v2063, %v2106
        %v2108 = vpop.f32.mrf.mxu0
        %v2109 = vadd.f32 %v2063, %v2108
        %2110 = vmatmul.bf16.gmra.mxu0 %v2070
        %v2111 = vpop.f32.mrf.mxu0
        %v2112 = vadd.f32 %v2063, %v2111
        %v2113 = vpop.f32.mrf.mxu0
        %v2114 = vadd.f32 %v2063, %v2113
        %2115 = vmatmul.bf16.gmra.mxu0 %v2073
        %v2116 = vpop.f32.mrf.mxu0
        %v2117 = vadd.f32 %v2063, %v2116
        %v2118 = vpop.f32.mrf.mxu0
        %v2119 = vadd.f32 %v2063, %v2118
        %2120 = vmatmul.bf16.gmra.mxu0 %v2076
        %v2121 = vpop.f32.mrf.mxu0
        %v2122 = vadd.f32 %v2063, %v2121
        %v2123 = vpop.f32.mrf.mxu0
        %v2124 = vadd.f32 %v2063, %v2123
        %2125 = vmatmul.bf16.gmra.mxu0 %v2079
        %v2126 = vpop.f32.mrf.mxu0
        %v2127 = vadd.f32 %v2063, %v2126
        %v2128 = vpop.f32.mrf.mxu0
        %v2129 = vadd.f32 %v2063, %v2128
        %2130 = vmatmul.bf16.gmra.mxu0 %v2082
        %v2131 = vpop.f32.mrf.mxu0
        %v2132 = vadd.f32 %v2063, %v2131
        %v2133 = vpop.f32.mrf.mxu0
        %v2134 = vadd.f32 %v2063, %v2133
        %2135 = vmatmul.bf16.gmra.mxu0 %v2085
        %v2136 = vpop.f32.mrf.mxu0
        %v2137 = vadd.f32 %v2063, %v2136
        %v2138 = vpop.f32.mrf.mxu0
        %v2139 = vadd.f32 %v2063, %v2138
        %2140 = vmatmul.bf16.gmra.mxu0 %v2088
        %v2141 = vpop.f32.mrf.mxu0
        %v2142 = vadd.f32 %v2063, %v2141
        %v2143 = vpop.f32.mrf.mxu0
        %v2144 = vadd.f32 %v2063, %v2143
        %2145 = vdwg.mxu0
        %v2146 = vadd.f32 %v2019, %v2107
        %v2147 = vadd.f32 %v2020, %v2109
        %v2148 = vadd.f32 %v2021, %v2112
        %v2149 = vadd.f32 %v2022, %v2114
        %v2150 = vadd.f32 %v2023, %v2117
        %v2151 = vadd.f32 %v2024, %v2119
        %v2152 = vadd.f32 %v2025, %v2122
        %v2153 = vadd.f32 %v2026, %v2124
        %v2154 = vadd.f32 %v2027, %v2127
        %v2155 = vadd.f32 %v2028, %v2129
        %v2156 = vadd.f32 %v2029, %v2132
        %v2157 = vadd.f32 %v2030, %v2134
        %v2158 = vadd.f32 %v2031, %v2137
        %v2159 = vadd.f32 %v2032, %v2139
        %v2160 = vadd.f32 %v2033, %v2142
        %v2161 = vadd.f32 %v2034, %v2144
        %v2162 = vpack.c.bf16 %v2147, %v2146
        %v2163 = vpack.c.bf16 %v2149, %v2148
        %v2164 = vpack.c.bf16 %v2151, %v2150
        %v2165 = vpack.c.bf16 %v2153, %v2152
        %v2166 = vpack.c.bf16 %v2155, %v2154
        %v2167 = vpack.c.bf16 %v2157, %v2156
        %v2168 = vpack.c.bf16 %v2159, %v2158
        %v2169 = vpack.c.bf16 %v2161, %v2160
        %v2170 = vld [vmem:[%s8] sm:$0xff]
        %v2171 = vld [vmem:[%s8 + $0x8] sm:$0xff]
        %v2172 = vld [vmem:[%s8 + $0x10] sm:$0xff]
        %v2173 = vld [vmem:[%s8 + $0x18] sm:$0xff]
        %v2174 = vld [vmem:[%s8 + $0x20] sm:$0xff]
        %v2175 = vld [vmem:[%s8 + $0x28] sm:$0xff]
        %v2176 = vld [vmem:[%s8 + $0x30] sm:$0xff]
        %v2177 = vld [vmem:[%s8 + $0x38] sm:$0xff]
        %v2178 = vld [vmem:[%s8 + $0x40] sm:$0xff]
        %v2179 = vld [vmem:[%s8 + $0x48] sm:$0xff]
        %v2180 = vld [vmem:[%s8 + $0x50] sm:$0xff]
        %v2181 = vld [vmem:[%s8 + $0x58] sm:$0xff]
        %v2182 = vld [vmem:[%s8 + $0x60] sm:$0xff]
        %v2183 = vld [vmem:[%s8 + $0x68] sm:$0xff]
        %v2184 = vld [vmem:[%s8 + $0x70] sm:$0xff]
        %v2185 = vld [vmem:[%s8 + $0x78] sm:$0xff]
        %v2186 = vpack.c.bf16 %v2171, %v2170
        %v2187 = vpack.c.bf16 %v2173, %v2172
        %v2188 = vpack.c.bf16 %v2175, %v2174
        %v2189 = vpack.c.bf16 %v2177, %v2176
        %v2190 = vpack.c.bf16 %v2179, %v2178
        %v2191 = vpack.c.bf16 %v2181, %v2180
        %v2192 = vpack.c.bf16 %v2183, %v2182
        %v2193 = vpack.c.bf16 %v2185, %v2184
        %v2194 = vld [vmem:[%s9] sm:$0x1]
        %v2196 = vperm.slane %v2194, 0
        %2198 = vmatpush.bf16.msra.mxu0 %v2193
        %2199 = vmatpush.bf16.msra.mxu0 %v2192
        %2200 = vmatpush.bf16.msra.mxu0 %v2191
        %2201 = vmatpush.bf16.msra.mxu0 %v2190
        %2202 = vmatpush.bf16.msra.mxu0 %v2189
        %2203 = vmatpush.bf16.msra.mxu0 %v2188
        %2204 = vmatpush.bf16.msra.mxu0 %v2187
        %2205 = vmatpush.bf16.msra.mxu0 %v2186
        %2206 = vmatmul.bf16.gmra.mxu0 %v2162
        %v2207 = vpop.f32.mrf.mxu0
        %v2208 = vadd.f32 %v2196, %v2207
        %v2209 = vpop.f32.mrf.mxu0
        %v2210 = vadd.f32 %v2196, %v2209
        %2211 = vmatmul.bf16.gmra.mxu0 %v2163
        %v2212 = vpop.f32.mrf.mxu0
        %v2213 = vadd.f32 %v2196, %v2212
        %v2214 = vpop.f32.mrf.mxu0
        %v2215 = vadd.f32 %v2196, %v2214
        %2216 = vmatmul.bf16.gmra.mxu0 %v2164
        %v2217 = vpop.f32.mrf.mxu0
        %v2218 = vadd.f32 %v2196, %v2217
        %v2219 = vpop.f32.mrf.mxu0
        %v2220 = vadd.f32 %v2196, %v2219
        %2221 = vmatmul.bf16.gmra.mxu0 %v2165
        %v2222 = vpop.f32.mrf.mxu0
        %v2223 = vadd.f32 %v2196, %v2222
        %v2224 = vpop.f32.mrf.mxu0
        %v2225 = vadd.f32 %v2196, %v2224
        %2226 = vmatmul.bf16.gmra.mxu0 %v2166
        %v2227 = vpop.f32.mrf.mxu0
        %v2228 = vadd.f32 %v2196, %v2227
        %v2229 = vpop.f32.mrf.mxu0
        %v2230 = vadd.f32 %v2196, %v2229
        %2231 = vmatmul.bf16.gmra.mxu0 %v2167
        %v2232 = vpop.f32.mrf.mxu0
        %v2233 = vadd.f32 %v2196, %v2232
        %v2234 = vpop.f32.mrf.mxu0
        %v2235 = vadd.f32 %v2196, %v2234
        %2236 = vmatmul.bf16.gmra.mxu0 %v2168
        %v2237 = vpop.f32.mrf.mxu0
        %v2238 = vadd.f32 %v2196, %v2237
        %v2239 = vpop.f32.mrf.mxu0
        %v2240 = vadd.f32 %v2196, %v2239
        %2241 = vmatmul.bf16.gmra.mxu0 %v2169
        %v2242 = vpop.f32.mrf.mxu0
        %v2243 = vadd.f32 %v2196, %v2242
        %v2244 = vpop.f32.mrf.mxu0
        %v2245 = vadd.f32 %v2196, %v2244
        %2246 = vdwg.mxu0
        %2247 = vst [vmem:[%s385] sm:$0xff] %v2208
        %2248 = vst [vmem:[%s385 + $0x8] sm:$0xff] %v2210
        %2249 = vst [vmem:[%s385 + $0x10] sm:$0xff] %v2213
        %2250 = vst [vmem:[%s385 + $0x18] sm:$0xff] %v2215
        %2251 = vst [vmem:[%s385 + $0x20] sm:$0xff] %v2218
        %2252 = vst [vmem:[%s385 + $0x28] sm:$0xff] %v2220
        %2253 = vst [vmem:[%s385 + $0x30] sm:$0xff] %v2223
        %2254 = vst [vmem:[%s385 + $0x38] sm:$0xff] %v2225
        %2255 = vst [vmem:[%s385 + $0x40] sm:$0xff] %v2228
        %2256 = vst [vmem:[%s385 + $0x48] sm:$0xff] %v2230
        %2257 = vst [vmem:[%s385 + $0x50] sm:$0xff] %v2233
        %2258 = vst [vmem:[%s385 + $0x58] sm:$0xff] %v2235
        %2259 = vst [vmem:[%s385 + $0x60] sm:$0xff] %v2238
        %2260 = vst [vmem:[%s385 + $0x68] sm:$0xff] %v2240
        %2261 = vst [vmem:[%s385 + $0x70] sm:$0xff] %v2243
        %2262 = vst [vmem:[%s385 + $0x78] sm:$0xff] %v2245
        %s2263 = sand.u32 %s257, 1
        %s2264 = scalar_lea.sflag [#allocation3], %s2263
        %s2265 = sand.u32 %s257, 1
        %s2266 = smul.addr %s2265, 128
        %s2267 = scalar_lea.vmem [#allocation2], %s2266
        // Predicated region
        $region61: #{tpu_custom_call.1} parent=59 // pred_check
          %p2268 = pneg %p267
        $region62: #{tpu_custom_call.1} parent=59 // pred_check_branch
          %2270 = sbr.rel (%p2268) target = $region64
        $region63: #{tpu_custom_call.1} parent=59 // pred_region
          %s2271 = smul.u32 16, %s24
          %2273 = vsyncadd %s2264, 0
          %s2274 = smul.addr %s2271, 8
          %s2275 = scalar_lea.hbm %s10, %s2274
          %s2276 = sshll.u32 %s2267, 4
          %s2277 = int_to_ptr.vmem [resolvable:$true] %s2276
          %s2278 = sshll.u32 %s2275, 4
          %s2279 = int_to_ptr.hbm [resolvable:$true] %s2278
          %2284 = dma.vmem_to_hbm [thread:$0]  %s2277, 2048, %s2279, %s2264, 128, 128, 8
        $region64: #{tpu_custom_call.1} parent=59 // pred_fallthru
          _
      $region60: #{tpu_custom_call.1} parent=5 // pred_fallthru
        _
      %p2285 = scmp.le.s32.totalorder 2, %s19
      // Predicated region
      $region65: #{tpu_custom_call.1} parent=5 // pred_check
        %p2286 = pneg %p2285
      $region66: #{tpu_custom_call.1} parent=5 // pred_check_branch
        %2288 = sbr.rel (%p2286) target = $region68
      $region67: #{tpu_custom_call.1} parent=5 // pred_region
        %s2289 = ssub.s32 %s19, 2
        // Predicated region
        $region69: #{tpu_custom_call.1} parent=67 // pred_check
          %p2290 = pneg %p273
        $region70: #{tpu_custom_call.1} parent=67 // pred_check_branch
          %2292 = sbr.rel (%p2290) target = $region72
        $region71: #{tpu_custom_call.1} parent=67 // pred_region
          %s2293 = sand.u32 %s258, 1
          %s2294 = scalar_lea.sflag [#allocation3], %s2293
          %s2295 = sand.u32 %s258, 1
          %s2296 = smul.addr %s2295, 128
          %s2297 = scalar_lea.vmem [#allocation2], %s2296
          %2299 = dma.done %s2294, 2048
        $region72: #{tpu_custom_call.1} parent=67 // pred_fallthru
          _
      $region68: #{tpu_custom_call.1} parent=5 // pred_fallthru
        _
    $region6: #{tpu_custom_call.1} parent=1 // loop_footer
      %s23 = sadd.s32 1, %s19
    $region7: #{tpu_custom_call.1} parent=1 // loop_footer_branch
      %18 = sbr.rel target = $region3
    $region8: #{tpu_custom_call.1} parent=1 // loop_exit
      _
    %2300 = vsyncpa [#allocation3], 1
    %s2301 = scalar_lea.sflag [#allocation3], 1
    %2302 = vsyncpa %s2301, 1

</llo_original>
